<compile_context>
chip_gen: v7x
topology: tpu7x:2x2x1
jax: 0.10.0
libtpu: 0.0.40
codegen_flags: <defaults>
</compile_context>

<pallas_src>
import math

import jax
import jax.numpy as jnp
from jax.experimental import pallas as pl
from jax.experimental.pallas import tpu as pltpu


def _round_up(n, m):
    return ((n + m - 1) // m) * m


def _cdiv(a, b):
    return -(-a // b)


# ---------------------------------------------------------------------------
# Parameter initialization (xavier_uniform weights, zero bias, like the spec)
# ---------------------------------------------------------------------------
def xavier_uniform(key, fan_in, fan_out):
    bound = math.sqrt(6.0 / (fan_in + fan_out))
    return jax.random.uniform(
        key, (fan_in, fan_out), jnp.float32, minval=-bound, maxval=bound
    )


def init_fc_network(key, input_units, hidden_units, output_units):
    """Weights stored as (in_features, out_features) so y = x @ W + b."""
    dims = (input_units,) + tuple(hidden_units) + (output_units,)
    ws, bs = [], []
    for din, dout in zip(dims[:-1], dims[1:]):
        key, sub = jax.random.split(key)
        ws.append(xavier_uniform(sub, din, dout))
        bs.append(jnp.zeros((dout,), jnp.float32))
    return ws, bs, key


# ---------------------------------------------------------------------------
# Parameter packing: one (8,128)-aligned slab, decoder+predictor block-diag,
# per-layer K/N padded to 128 (not to the full slab width).
# ---------------------------------------------------------------------------
def _pack_params(enc_params, dec_params, pred_params,
                 input_units, hidden_units, rep_units, output_units, dtype):
    enc_w, enc_b = enc_params
    dec_w, dec_b = dec_params
    prd_w, prd_b = pred_params
    n_enc = len(enc_w)
    n_fused = len(dec_w)
    out_cat = rep_units + input_units + output_units

    blocks = []  # (w_block (K_pad, N_pad), b_block (N_pad,), relu)

    # ---- encoder: input -> hidden... -> rep  (rep at cols [0:rep_units)) ----
    for i in range(n_enc):
        din, dout = enc_w[i].shape
        kp, npad = _round_up(din, 128), _round_up(dout, 128)
        w = jnp.zeros((kp, npad), dtype).at[:din, :dout].set(enc_w[i].astype(dtype))
        b = jnp.zeros((npad,), dtype).at[:dout].set(enc_b[i].astype(dtype))
        blocks.append((w, b, i < n_enc - 1))

    # ---- fused decoder/predictor: block-diagonal weights, shared rep input --
    # fused hidden layout at layer k: cols [0:h_k)=decoder, [h_k:2h_k)=predictor
    for k in range(n_fused):
        dw, db = dec_w[k], dec_b[k]
        pw, pb = prd_w[k], prd_b[k]
        din_d, dout_d = dw.shape
        din_p, dout_p = pw.shape
        if k == 0:                               # shared input = rep
            kp = _round_up(din_d, 128)
            npad = _round_up(dout_d + dout_p, 128)
            w = jnp.zeros((kp, npad), dtype)
            w = w.at[:din_d, :dout_d].set(dw.astype(dtype))
            w = w.at[:din_p, dout_d:dout_d + dout_p].set(pw.astype(dtype))
            b = (jnp.zeros((npad,), dtype)
                 .at[:dout_d].set(db.astype(dtype))
                 .at[dout_d:dout_d + dout_p].set(pb.astype(dtype)))
            blocks.append((w, b, True))
        elif k < n_fused - 1:                    # block-diagonal body layer
            kp = _round_up(din_d + din_p, 128)
            npad = _round_up(dout_d + dout_p, 128)
            w = jnp.zeros((kp, npad), dtype)
            w = w.at[:din_d, :dout_d].set(dw.astype(dtype))
            w = w.at[din_d:din_d + din_p,
                     dout_d:dout_d + dout_p].set(pw.astype(dtype))
            b = (jnp.zeros((npad,), dtype)
                 .at[:dout_d].set(db.astype(dtype))
                 .at[dout_d:dout_d + dout_p].set(pb.astype(dtype)))
            blocks.append((w, b, True))
        else:                                    # fused head -> [0 | vae | pred]
            kp = _round_up(din_d + din_p, 128)
            npad = _round_up(out_cat, 128)
            w = jnp.zeros((kp, npad), dtype)
            w = w.at[:din_d,
                     rep_units:rep_units + input_units].set(dw.astype(dtype))
            w = w.at[din_d:din_d + din_p,
                     rep_units + input_units:out_cat].set(pw.astype(dtype))
            b = (jnp.zeros((npad,), dtype)
                 .at[rep_units:rep_units + input_units].set(db.astype(dtype))
                 .at[rep_units + input_units:out_cat].set(pb.astype(dtype)))
            blocks.append((w, b, False))

    slab_w = max(w.shape[1] for w, _, _ in blocks)
    layer_meta, rows, off = [], [], 0
    for w, b, relu in blocks:
        kp, npad = w.shape
        if npad < slab_w:
            w = jnp.pad(w, ((0, 0), (0, slab_w - npad)))
        rows.append(w)
        layer_meta.append((off, kp, npad, relu))
        off += kp                                 # kp is a multiple of 128

    bias_off = off
    n_layers = len(blocks)
    bias_rows = _round_up(n_layers, 16)           # safe for bf16 sublane packing
    bias_mat = jnp.zeros((bias_rows, slab_w), dtype)
    for i, (_, b, _) in enumerate(blocks):
        bias_mat = bias_mat.at[i, :b.shape[0]].set(b)

    slab = jnp.concatenate(rows + [bias_mat], axis=0)
    rep_pad = _round_up(rep_units, 128)
    out_pad = _round_up(out_cat, 128)
    in_p = _round_up(input_units, 128)
    return (slab, tuple(layer_meta), bias_off, bias_rows, n_enc,
            in_p, rep_pad, out_pad, out_cat)


# ---------------------------------------------------------------------------
# Pallas kernel
# ---------------------------------------------------------------------------
def _make_kernel(layer_meta, bias_off, bias_rows, n_enc, rep_pad, out_pad):
    def kernel(x_ref, p_ref, o_ref):
        # One aligned load of all biases; per-layer rows sliced in-register.
        b_all = p_ref[bias_off:bias_off + bias_rows, :]
        h = x_ref[...]
        rep = None
        for li, (off, kp, npad, relu) in enumerate(layer_meta):
            w = p_ref[off:off + kp, :npad]          # static 128-aligned view
            h = jnp.dot(h.astype(w.dtype), w,       # bf16 MXU, f32 accumulate
                        preferred_element_type=jnp.float32)
            h = h + b_all[li, :npad].astype(jnp.float32)
            if relu:
                h = jnp.maximum(h, 0.0)
            if li == n_enc - 1:                     # linear encoder head
                rep = h                             # (tile_m, rep_pad)
        # Fused-head output h is zero in cols [0:rep_units); overlay rep there.
        if rep_pad == out_pad:
            o_ref[...] = (rep + h).astype(o_ref.dtype)
        else:
            o_ref[:, :rep_pad] = (rep + h[:, :rep_pad]).astype(o_ref.dtype)
            o_ref[:, rep_pad:] = h[:, rep_pad:].astype(o_ref.dtype)

    return kernel


# ---------------------------------------------------------------------------
# Tiling / VMEM heuristics
# ---------------------------------------------------------------------------
def _choose_tile_m(batch, block_m):
    block_m = max(8, int(block_m))
    if batch >= 256:
        # 128-multiples and >=2 grid steps (v7x has 2 TensorCores to shard).
        tm = min(_round_up(block_m, 128), _round_up(_cdiv(batch, 2), 128))
        return max(128, tm)
    if batch > 128:
        return 128
    if batch > 16:
        return min(_round_up(block_m, 8), _round_up(_cdiv(batch, 2), 8))
    return min(_round_up(block_m, 8), _round_up(batch, 8))


def _vmem_estimate(tile_m, in_p, out_pad, slab_w, slab_nbytes, dsize):
    return (2 * tile_m * in_p * dsize        # double-buffered x tiles
            + 2 * tile_m * out_pad * 4       # double-buffered f32 out tiles
            + slab_nbytes                    # resident parameter slab
            + 4 * tile_m * slab_w * 4)       # live f32 activations headroom


# ---------------------------------------------------------------------------
# Wrapper
# ---------------------------------------------------------------------------
def two_headed_predictor(x, enc_params, dec_params, pred_params,
                         input_units, hidden_units, rep_units, output_units,
                         *, block_m=512, compute_dtype=jnp.bfloat16,
                         vmem_budget_bytes=48 * 1024 * 1024):
    assert len(hidden_units) >= 1
    if x.ndim > 2:
        x = x.reshape(x.shape[0], -1)
    batch = x.shape[0]

    (slab, layer_meta, bias_off, bias_rows, n_enc,
     in_p, rep_pad, out_pad, out_cat) = _pack_params(
        enc_params, dec_params, pred_params,
        input_units, hidden_units, rep_units, output_units, compute_dtype)
    slab_w = slab.shape[1]
    dsize = jnp.dtype(compute_dtype).itemsize
    slab_bytes = slab.size * dsize

    tile_m = _choose_tile_m(batch, block_m)
    while (_vmem_estimate(tile_m, in_p, out_pad, slab_w, slab_bytes, dsize)
           > vmem_budget_bytes and tile_m > 8):
        tile_m = max(8, _round_up(tile_m // 2, 8))
    padded_batch = _round_up(batch, tile_m)
    grid = (padded_batch // tile_m,)

    x = x.astype(compute_dtype)
    pad_r, pad_c = padded_batch - batch, in_p - x.shape[1]
    x_p = jnp.pad(x, ((0, pad_r), (0, pad_c))) if (pad_r or pad_c) else x

    flops = 2 * padded_batch * sum(kp * npad for _, kp, npad, _ in layer_meta)
    bytes_accessed = (x_p.size * dsize + slab_bytes + padded_batch * out_pad * 4)
    vmem_limit = int(min(
        56 * 1024 * 1024,
        max(32 * 1024 * 1024,
            2 * _vmem_estimate(tile_m, in_p, out_pad, slab_w, slab_bytes, dsize))))

    kernel = _make_kernel(layer_meta, bias_off, bias_rows, n_enc, rep_pad, out_pad)

    def _run(param_pipeline_mode):
        if param_pipeline_mode is None:
            param_spec = pl.BlockSpec(slab.shape, lambda i: (0, 0))
        else:
            # Single resident buffer for the never-changing parameter block.
            param_spec = pl.BlockSpec(slab.shape, lambda i: (0, 0),
                                      pipeline_mode=param_pipeline_mode)
        call = pl.pallas_call(
            kernel,
            out_shape=jax.ShapeDtypeStruct((padded_batch, out_pad), jnp.float32),
            grid=grid,
            in_specs=[pl.BlockSpec((tile_m, in_p), lambda i: (i, 0)),
                      param_spec],
            out_specs=pl.BlockSpec((tile_m, out_pad), lambda i: (i, 0)),
            compiler_params=pltpu.CompilerParams(
                dimension_semantics=("parallel",),
                vmem_limit_bytes=vmem_limit),
            cost_estimate=pl.CostEstimate(
                flops=flops, transcendentals=0, bytes_accessed=bytes_accessed),
        )
        return jax.block_until_ready(call(x_p, slab))

    try:
        out = _run(pl.Buffered(1))
    except Exception:
        # pipeline_mode / Buffered(1) unavailable -> default double buffering.
        out = _run(None)

    rep = out[:batch, :rep_units]
    vae = out[:batch, rep_units:rep_units + input_units]
    pred = out[:batch, rep_units + input_units:out_cat]
    return rep, vae, pred


# ---------------------------------------------------------------------------
# Pure-JAX reference (mirrors the PyTorch module)
# ---------------------------------------------------------------------------
def _run_mlp(x, ws, bs):
    h = x
    for i in range(len(ws)):
        h = h @ ws[i] + bs[i]
        if i < len(ws) - 1:
            h = jnp.maximum(h, 0.0)
    return h


def reference_forward(x, enc_params, dec_params, pred_params):
    if x.ndim > 2:
        x = x.reshape(x.shape[0], -1)
    rep = _run_mlp(x, *enc_params)
    vae = _run_mlp(rep, *dec_params)
    pr = _run_mlp(rep, *pred_params)
    return rep, vae, pr


if __name__ == "__main__":
    batch = 50
    input_units = 32
    hidden_units = (64, 48)
    rep_units = 16
    output_units = 4

    key = jax.random.PRNGKey(0)
    enc_w, enc_b, key = init_fc_network(key, input_units, hidden_units, rep_units)
    dec_w, dec_b, key = init_fc_network(key, rep_units, hidden_units[::-1], input_units)
    prd_w, prd_b, key = init_fc_network(key, rep_units, hidden_units[::-1], output_units)

    key, xkey = jax.random.split(key)
    x = jax.random.normal(xkey, (batch, input_units), dtype=jnp.float32)

    rep_r, vae_r, pred_r = reference_forward(
        x, (enc_w, enc_b), (dec_w, dec_b), (prd_w, prd_b))

    # f32-compute run: verifies the packing / block-diagonal fusion exactly.
    rep32, vae32, pred32 = two_headed_predictor(
        x, (enc_w, enc_b), (dec_w, dec_b), (prd_w, prd_b),
        input_units, hidden_units, rep_units, output_units,
        compute_dtype=jnp.float32)
    jax.block_until_ready((rep32, vae32, pred32))
    assert rep32.shape == rep_r.shape and vae32.shape == vae_r.shape
    assert pred32.shape == pred_r.shape
    assert jnp.allclose(rep32, rep_r, atol=1e-4, rtol=1e-4)
    assert jnp.allclose(vae32, vae_r, atol=1e-4, rtol=1e-4)
    assert jnp.allclose(pred32, pred_r, atol=1e-4, rtol=1e-4)

    # Default bf16 compute (MXU-native): compare with looser tolerances.
    rep, vae_out, prediction = two_headed_predictor(
        x, (enc_w, enc_b), (dec_w, dec_b), (prd_w, prd_b),
        input_units, hidden_units, rep_units, output_units)
    jax.block_until_ready((rep, vae_out, prediction))
    assert rep.shape == rep_r.shape and vae_out.shape == vae_r.shape
    assert prediction.shape == pred_r.shape
    assert jnp.allclose(rep, rep_r, atol=8e-2, rtol=8e-2)
    assert jnp.allclose(vae_out, vae_r, atol=8e-2, rtol=8e-2)
    assert jnp.allclose(prediction, pred_r, atol=8e-2, rtol=8e-2)

    print("KERNEL_OK")
</pallas_src>

<mosaic_0001>
module attributes {stable_mosaic.version = 11 : i64} {
  func.func @kernel(%arg0: i32, %arg1: memref<32x128xf32, #tpu.memory_space<vmem>>, %arg2: memref<784x128xf32, #tpu.memory_space<vmem>>, %arg3: memref<32x128xf32, #tpu.memory_space<vmem>>) attributes {dimension_semantics = [#tpu.dimension_semantics<parallel>], iteration_bounds = array<i64: 2>, scalar_prefetch = 0 : i64, scratch_operands = 0 : i64, tpu.core_type = #tpu.core_type<tc>, window_params = [{transform_indices = @transform_0, window_bounds = array<i64: 32, 128>}, {pipeline_mode = #tpu.pipeline_mode<synchronous>, transform_indices = @transform_1, window_bounds = array<i64: 784, 128>}, {transform_indices = @transform_2, window_bounds = array<i64: 32, 128>}]} {
    %c768 = arith.constant 768 : index
    %c0 = arith.constant 0 : index
    %0 = vector.load %arg2[%c768, %c0] : memref<784x128xf32, #tpu.memory_space<vmem>>, vector<16x128xf32>
    %c0_0 = arith.constant 0 : index
    %c0_1 = arith.constant 0 : index
    %1 = vector.load %arg1[%c0_0, %c0_1] : memref<32x128xf32, #tpu.memory_space<vmem>>, vector<32x128xf32>
    %c0_2 = arith.constant 0 : index
    %c0_3 = arith.constant 0 : index
    %2 = vector.load %arg2[%c0_2, %c0_3] : memref<784x128xf32, #tpu.memory_space<vmem>>, vector<128x128xf32>
    %cst = arith.constant dense<0.000000e+00> : vector<32x128xf32>
    %3 = tpu.matmul %1, %2, %cst {dimension_numbers = #tpu.dot_dimension_numbers<[1], [0], [0], [1], [0, 0, 1, 1], [], []>} : vector<32x128xf32>, vector<128x128xf32>, vector<32x128xf32> -> vector<32x128xf32>
    %4 = vector.extract_strided_slice %0 {offsets = [0, 0], sizes = [1, 128], strides = [1, 1]} : vector<16x128xf32> to vector<1x128xf32>
    %5 = vector.shape_cast %4 : vector<1x128xf32> to vector<128xf32>
    %6 = vector.shape_cast %5 : vector<128xf32> to vector<1x128xf32>
    %7 = vector.broadcast %6 : vector<1x128xf32> to vector<32x128xf32>
    %8 = arith.addf %3, %7 : vector<32x128xf32>
    %cst_4 = arith.constant 0.000000e+00 : f32
    %9 = vector.broadcast %cst_4 : f32 to vector<32x128xf32>
    %10 = arith.maximumf %8, %9 : vector<32x128xf32>
    %c128 = arith.constant 128 : index
    %c0_5 = arith.constant 0 : index
    %11 = vector.load %arg2[%c128, %c0_5] : memref<784x128xf32, #tpu.memory_space<vmem>>, vector<128x128xf32>
    %cst_6 = arith.constant dense<0.000000e+00> : vector<32x128xf32>
    %12 = tpu.matmul %10, %11, %cst_6 {dimension_numbers = #tpu.dot_dimension_numbers<[1], [0], [0], [1], [0, 0, 1, 1], [], []>} : vector<32x128xf32>, vector<128x128xf32>, vector<32x128xf32> -> vector<32x128xf32>
    %13 = vector.extract_strided_slice %0 {offsets = [1, 0], sizes = [1, 128], strides = [1, 1]} : vector<16x128xf32> to vector<1x128xf32>
    %14 = vector.shape_cast %13 : vector<1x128xf32> to vector<128xf32>
    %15 = vector.shape_cast %14 : vector<128xf32> to vector<1x128xf32>
    %16 = vector.broadcast %15 : vector<1x128xf32> to vector<32x128xf32>
    %17 = arith.addf %12, %16 : vector<32x128xf32>
    %cst_7 = arith.constant 0.000000e+00 : f32
    %18 = vector.broadcast %cst_7 : f32 to vector<32x128xf32>
    %19 = arith.maximumf %17, %18 : vector<32x128xf32>
    %c256 = arith.constant 256 : index
    %c0_8 = arith.constant 0 : index
    %20 = vector.load %arg2[%c256, %c0_8] : memref<784x128xf32, #tpu.memory_space<vmem>>, vector<128x128xf32>
    %cst_9 = arith.constant dense<0.000000e+00> : vector<32x128xf32>
    %21 = tpu.matmul %19, %20, %cst_9 {dimension_numbers = #tpu.dot_dimension_numbers<[1], [0], [0], [1], [0, 0, 1, 1], [], []>} : vector<32x128xf32>, vector<128x128xf32>, vector<32x128xf32> -> vector<32x128xf32>
    %22 = vector.extract_strided_slice %0 {offsets = [2, 0], sizes = [1, 128], strides = [1, 1]} : vector<16x128xf32> to vector<1x128xf32>
    %23 = vector.shape_cast %22 : vector<1x128xf32> to vector<128xf32>
    %24 = vector.shape_cast %23 : vector<128xf32> to vector<1x128xf32>
    %25 = vector.broadcast %24 : vector<1x128xf32> to vector<32x128xf32>
    %26 = arith.addf %21, %25 : vector<32x128xf32>
    %c384 = arith.constant 384 : index
    %c0_10 = arith.constant 0 : index
    %27 = vector.load %arg2[%c384, %c0_10] : memref<784x128xf32, #tpu.memory_space<vmem>>, vector<128x128xf32>
    %cst_11 = arith.constant dense<0.000000e+00> : vector<32x128xf32>
    %28 = tpu.matmul %26, %27, %cst_11 {dimension_numbers = #tpu.dot_dimension_numbers<[1], [0], [0], [1], [0, 0, 1, 1], [], []>} : vector<32x128xf32>, vector<128x128xf32>, vector<32x128xf32> -> vector<32x128xf32>
    %29 = vector.extract_strided_slice %0 {offsets = [3, 0], sizes = [1, 128], strides = [1, 1]} : vector<16x128xf32> to vector<1x128xf32>
    %30 = vector.shape_cast %29 : vector<1x128xf32> to vector<128xf32>
    %31 = vector.shape_cast %30 : vector<128xf32> to vector<1x128xf32>
    %32 = vector.broadcast %31 : vector<1x128xf32> to vector<32x128xf32>
    %33 = arith.addf %28, %32 : vector<32x128xf32>
    %cst_12 = arith.constant 0.000000e+00 : f32
    %34 = vector.broadcast %cst_12 : f32 to vector<32x128xf32>
    %35 = arith.maximumf %33, %34 : vector<32x128xf32>
    %c512 = arith.constant 512 : index
    %c0_13 = arith.constant 0 : index
    %36 = vector.load %arg2[%c512, %c0_13] : memref<784x128xf32, #tpu.memory_space<vmem>>, vector<128x128xf32>
    %cst_14 = arith.constant dense<0.000000e+00> : vector<32x128xf32>
    %37 = tpu.matmul %35, %36, %cst_14 {dimension_numbers = #tpu.dot_dimension_numbers<[1], [0], [0], [1], [0, 0, 1, 1], [], []>} : vector<32x128xf32>, vector<128x128xf32>, vector<32x128xf32> -> vector<32x128xf32>
    %38 = vector.extract_strided_slice %0 {offsets = [4, 0], sizes = [1, 128], strides = [1, 1]} : vector<16x128xf32> to vector<1x128xf32>
    %39 = vector.shape_cast %38 : vector<1x128xf32> to vector<128xf32>
    %40 = vector.shape_cast %39 : vector<128xf32> to vector<1x128xf32>
    %41 = vector.broadcast %40 : vector<1x128xf32> to vector<32x128xf32>
    %42 = arith.addf %37, %41 : vector<32x128xf32>
    %cst_15 = arith.constant 0.000000e+00 : f32
    %43 = vector.broadcast %cst_15 : f32 to vector<32x128xf32>
    %44 = arith.maximumf %42, %43 : vector<32x128xf32>
    %c640 = arith.constant 640 : index
    %c0_16 = arith.constant 0 : index
    %45 = vector.load %arg2[%c640, %c0_16] : memref<784x128xf32, #tpu.memory_space<vmem>>, vector<128x128xf32>
    %cst_17 = arith.constant dense<0.000000e+00> : vector<32x128xf32>
    %46 = tpu.matmul %44, %45, %cst_17 {dimension_numbers = #tpu.dot_dimension_numbers<[1], [0], [0], [1], [0, 0, 1, 1], [], []>} : vector<32x128xf32>, vector<128x128xf32>, vector<32x128xf32> -> vector<32x128xf32>
    %47 = vector.extract_strided_slice %0 {offsets = [5, 0], sizes = [1, 128], strides = [1, 1]} : vector<16x128xf32> to vector<1x128xf32>
    %48 = vector.shape_cast %47 : vector<1x128xf32> to vector<128xf32>
    %49 = vector.shape_cast %48 : vector<128xf32> to vector<1x128xf32>
    %50 = vector.broadcast %49 : vector<1x128xf32> to vector<32x128xf32>
    %51 = arith.addf %46, %50 : vector<32x128xf32>
    %52 = arith.addf %26, %51 : vector<32x128xf32>
    %c0_18 = arith.constant 0 : index
    %c0_19 = arith.constant 0 : index
    %53 = vector.load %arg3[%c0_18, %c0_19] : memref<32x128xf32, #tpu.memory_space<vmem>>, vector<32x128xf32>
    tpu.vector_store %arg3[%c0_18, %c0_19], %52 {strides = array<i32>} : memref<32x128xf32, #tpu.memory_space<vmem>>, vector<32x128xf32>,
    return
  }
  func.func @transform_0(%arg0: i32) -> (i32, i32) {
    %c0_i32 = arith.constant 0 : i32
    %c0_i32_0 = arith.constant 0 : i32
    return %arg0, %c0_i32 : i32, i32
  }
  func.func @transform_1(%arg0: i32) -> (i32, i32) {
    %c0_i32 = arith.constant 0 : i32
    %c0_i32_0 = arith.constant 0 : i32
    %c0_i32_1 = arith.constant 0 : i32
    return %c0_i32, %c0_i32_0 : i32, i32
  }
  func.func @transform_2(%arg0: i32) -> (i32, i32) {
    %c0_i32 = arith.constant 0 : i32
    %c0_i32_0 = arith.constant 0 : i32
    return %arg0, %c0_i32 : i32, i32
  }
}

module attributes {stable_mosaic.version = 11 : i64} {
  func.func @kernel(%arg0: i32, %arg1: memref<32x128xf32, #tpu.memory_space<vmem>>, %arg2: memref<784x128xf32, #tpu.memory_space<vmem>>, %arg3: memref<32x128xf32, #tpu.memory_space<vmem>>) attributes {dimension_semantics = [#tpu.dimension_semantics<parallel>], iteration_bounds = array<i64: 2>, scalar_prefetch = 0 : i64, scratch_operands = 0 : i64, tpu.core_type = #tpu.core_type<tc>, window_params = [{transform_indices = @transform_0, window_bounds = array<i64: 32, 128>}, {pipeline_mode = #tpu.pipeline_mode<synchronous>, transform_indices = @transform_1, window_bounds = array<i64: 784, 128>}, {transform_indices = @transform_2, window_bounds = array<i64: 32, 128>}]} {
    %c768 = arith.constant 768 : index
    %c0 = arith.constant 0 : index
    %0 = vector.load %arg2[%c768, %c0] : memref<784x128xf32, #tpu.memory_space<vmem>>, vector<16x128xf32>
    %c0_0 = arith.constant 0 : index
    %c0_1 = arith.constant 0 : index
    %1 = vector.load %arg1[%c0_0, %c0_1] : memref<32x128xf32, #tpu.memory_space<vmem>>, vector<32x128xf32>
    %c0_2 = arith.constant 0 : index
    %c0_3 = arith.constant 0 : index
    %2 = vector.load %arg2[%c0_2, %c0_3] : memref<784x128xf32, #tpu.memory_space<vmem>>, vector<128x128xf32>
    %cst = arith.constant dense<0.000000e+00> : vector<32x128xf32>
    %3 = tpu.matmul %1, %2, %cst {dimension_numbers = #tpu.dot_dimension_numbers<[1], [0], [0], [1], [0, 0, 1, 1], [], []>} : vector<32x128xf32>, vector<128x128xf32>, vector<32x128xf32> -> vector<32x128xf32>
    %4 = vector.extract_strided_slice %0 {offsets = [0, 0], sizes = [1, 128], strides = [1, 1]} : vector<16x128xf32> to vector<1x128xf32>
    %5 = vector.shape_cast %4 : vector<1x128xf32> to vector<128xf32>
    %6 = vector.shape_cast %5 : vector<128xf32> to vector<1x128xf32>
    %7 = vector.broadcast %6 : vector<1x128xf32> to vector<32x128xf32>
    %8 = arith.addf %3, %7 : vector<32x128xf32>
    %cst_4 = arith.constant 0.000000e+00 : f32
    %9 = vector.broadcast %cst_4 : f32 to vector<32x128xf32>
    %10 = arith.maximumf %8, %9 : vector<32x128xf32>
    %c128 = arith.constant 128 : index
    %c0_5 = arith.constant 0 : index
    %11 = vector.load %arg2[%c128, %c0_5] : memref<784x128xf32, #tpu.memory_space<vmem>>, vector<128x128xf32>
    %cst_6 = arith.constant dense<0.000000e+00> : vector<32x128xf32>
    %12 = tpu.matmul %10, %11, %cst_6 {dimension_numbers = #tpu.dot_dimension_numbers<[1], [0], [0], [1], [0, 0, 1, 1], [], []>} : vector<32x128xf32>, vector<128x128xf32>, vector<32x128xf32> -> vector<32x128xf32>
    %13 = vector.extract_strided_slice %0 {offsets = [1, 0], sizes = [1, 128], strides = [1, 1]} : vector<16x128xf32> to vector<1x128xf32>
    %14 = vector.shape_cast %13 : vector<1x128xf32> to vector<128xf32>
    %15 = vector.shape_cast %14 : vector<128xf32> to vector<1x128xf32>
    %16 = vector.broadcast %15 : vector<1x128xf32> to vector<32x128xf32>
    %17 = arith.addf %12, %16 : vector<32x128xf32>
    %cst_7 = arith.constant 0.000000e+00 : f32
    %18 = vector.broadcast %cst_7 : f32 to vector<32x128xf32>
    %19 = arith.maximumf %17, %18 : vector<32x128xf32>
    %c256 = arith.constant 256 : index
    %c0_8 = arith.constant 0 : index
    %20 = vector.load %arg2[%c256, %c0_8] : memref<784x128xf32, #tpu.memory_space<vmem>>, vector<128x128xf32>
    %cst_9 = arith.constant dense<0.000000e+00> : vector<32x128xf32>
    %21 = tpu.matmul %19, %20, %cst_9 {dimension_numbers = #tpu.dot_dimension_numbers<[1], [0], [0], [1], [0, 0, 1, 1], [], []>} : vector<32x128xf32>, vector<128x128xf32>, vector<32x128xf32> -> vector<32x128xf32>
    %22 = vector.extract_strided_slice %0 {offsets = [2, 0], sizes = [1, 128], strides = [1, 1]} : vector<16x128xf32> to vector<1x128xf32>
    %23 = vector.shape_cast %22 : vector<1x128xf32> to vector<128xf32>
    %24 = vector.shape_cast %23 : vector<128xf32> to vector<1x128xf32>
    %25 = vector.broadcast %24 : vector<1x128xf32> to vector<32x128xf32>
    %26 = arith.addf %21, %25 : vector<32x128xf32>
    %c384 = arith.constant 384 : index
    %c0_10 = arith.constant 0 : index
    %27 = vector.load %arg2[%c384, %c0_10] : memref<784x128xf32, #tpu.memory_space<vmem>>, vector<128x128xf32>
    %cst_11 = arith.constant dense<0.000000e+00> : vector<32x128xf32>
    %28 = tpu.matmul %26, %27, %cst_11 {dimension_numbers = #tpu.dot_dimension_numbers<[1], [0], [0], [1], [0, 0, 1, 1], [], []>} : vector<32x128xf32>, vector<128x128xf32>, vector<32x128xf32> -> vector<32x128xf32>
    %29 = vector.extract_strided_slice %0 {offsets = [3, 0], sizes = [1, 128], strides = [1, 1]} : vector<16x128xf32> to vector<1x128xf32>
    %30 = vector.shape_cast %29 : vector<1x128xf32> to vector<128xf32>
    %31 = vector.shape_cast %30 : vector<128xf32> to vector<1x128xf32>
    %32 = vector.broadcast %31 : vector<1x128xf32> to vector<32x128xf32>
    %33 = arith.addf %28, %32 : vector<32x128xf32>
    %cst_12 = arith.constant 0.000000e+00 : f32
    %34 = vector.broadcast %cst_12 : f32 to vector<32x128xf32>
    %35 = arith.maximumf %33, %34 : vector<32x128xf32>
    %c512 = arith.constant 512 : index
    %c0_13 = arith.constant 0 : index
    %36 = vector.load %arg2[%c512, %c0_13] : memref<784x128xf32, #tpu.memory_space<vmem>>, vector<128x128xf32>
    %cst_14 = arith.constant dense<0.000000e+00> : vector<32x128xf32>
    %37 = tpu.matmul %35, %36, %cst_14 {dimension_numbers = #tpu.dot_dimension_numbers<[1], [0], [0], [1], [0, 0, 1, 1], [], []>} : vector<32x128xf32>, vector<128x128xf32>, vector<32x128xf32> -> vector<32x128xf32>
    %38 = vector.extract_strided_slice %0 {offsets = [4, 0], sizes = [1, 128], strides = [1, 1]} : vector<16x128xf32> to vector<1x128xf32>
    %39 = vector.shape_cast %38 : vector<1x128xf32> to vector<128xf32>
    %40 = vector.shape_cast %39 : vector<128xf32> to vector<1x128xf32>
    %41 = vector.broadcast %40 : vector<1x128xf32> to vector<32x128xf32>
    %42 = arith.addf %37, %41 : vector<32x128xf32>
    %cst_15 = arith.constant 0.000000e+00 : f32
    %43 = vector.broadcast %cst_15 : f32 to vector<32x128xf32>
    %44 = arith.maximumf %42, %43 : vector<32x128xf32>
    %c640 = arith.constant 640 : index
    %c0_16 = arith.constant 0 : index
    %45 = vector.load %arg2[%c640, %c0_16] : memref<784x128xf32, #tpu.memory_space<vmem>>, vector<128x128xf32>
    %cst_17 = arith.constant dense<0.000000e+00> : vector<32x128xf32>
    %46 = tpu.matmul %44, %45, %cst_17 {dimension_numbers = #tpu.dot_dimension_numbers<[1], [0], [0], [1], [0, 0, 1, 1], [], []>} : vector<32x128xf32>, vector<128x128xf32>, vector<32x128xf32> -> vector<32x128xf32>
    %47 = vector.extract_strided_slice %0 {offsets = [5, 0], sizes = [1, 128], strides = [1, 1]} : vector<16x128xf32> to vector<1x128xf32>
    %48 = vector.shape_cast %47 : vector<1x128xf32> to vector<128xf32>
    %49 = vector.shape_cast %48 : vector<128xf32> to vector<1x128xf32>
    %50 = vector.broadcast %49 : vector<1x128xf32> to vector<32x128xf32>
    %51 = arith.addf %46, %50 : vector<32x128xf32>
    %52 = arith.addf %26, %51 : vector<32x128xf32>
    %c0_18 = arith.constant 0 : index
    %c0_19 = arith.constant 0 : index
    %53 = vector.load %arg3[%c0_18, %c0_19] : memref<32x128xf32, #tpu.memory_space<vmem>>, vector<32x128xf32>
    tpu.vector_store %arg3[%c0_18, %c0_19], %52 {strides = array<i32>} : memref<32x128xf32, #tpu.memory_space<vmem>>, vector<32x128xf32>,
    return
  }
  func.func @transform_0(%arg0: i32) -> (i32, i32) {
    %c0_i32 = arith.constant 0 : i32
    %c0_i32_0 = arith.constant 0 : i32
    return %arg0, %c0_i32 : i32, i32
  }
  func.func @transform_1(%arg0: i32) -> (i32, i32) {
    %c0_i32 = arith.constant 0 : i32
    %c0_i32_0 = arith.constant 0 : i32
    %c0_i32_1 = arith.constant 0 : i32
    return %c0_i32, %c0_i32_0 : i32, i32
  }
  func.func @transform_2(%arg0: i32) -> (i32, i32) {
    %c0_i32 = arith.constant 0 : i32
    %c0_i32_0 = arith.constant 0 : i32
    return %arg0, %c0_i32 : i32, i32
  }
}

</mosaic_0001>

<llo_original>
// kernel: tpu_custom_call.1
$region0: #{tpu_custom_call.1}
  #allocation0 [shape = 'u32[]', space=smem, size = 0x4, offset = 0x4, fixed_abs, tag = 'smem constant byte address 0x4 - core index']
  #allocation1 [shape = 'u32[144,128]{1,0:T(1,128)}', space=vmem, size = 0x12000, scoped, tag = 'internal scratch']
  %s0 = inlined_call_operand.hbm [shape: f32[64,128], index: 0, kind: input, shape index: {}]
  %s1 = inlined_call_operand.hbm [shape: f32[784,128], index: 1, kind: input, shape index: {}]
  %s2 = inlined_call_operand.hbm [shape: f32[64,128], index: 2, kind: output, shape index: {}]
  %s3 = sld [smem:[#allocation0]]
  $region49: #{tpu_custom_call.1} parent=0
    _
  %s5 = ssub.s32 1, %s3
  %s6 = scalar_select 0, %s5, %s3
  $region1: #{tpu_custom_call.1} parent=0
    #allocation2 [shape = 'u8[32768]{0}', space=vmem, size = 0x8000, scoped, tag = 'input window, operand 0']
    #allocation3 [shape = 's32[2]{0}', space=sflag, size = 0x8, scoped, tag = 'scoped memory for tpu_custom_call.1']
    #allocation4 [shape = 's32[2]{0}', space=sflag, size = 0x8, scoped, tag = 'scoped memory for tpu_custom_call.1']
    #allocation5 [shape = 'u8[401408]{0}', space=vmem, size = 0x62000, scoped, tag = 'input window, operand 1, single buffered']
    #allocation6 [shape = 's32[1]{0}', space=sflag, size = 0x4, scoped, tag = 'scoped memory for tpu_custom_call.1']
    #allocation7 [shape = 'u8[32768]{0}', space=vmem, size = 0x8000, scoped, tag = 'output window, operand 0']
    %7 = vsyncpa [#allocation3], 0
    %s8 = scalar_lea.sflag [#allocation3], 1
    %9 = vsyncpa %s8, 0
    %10 = vsyncpa [#allocation6], 0
    %11 = vsyncpa [#allocation4], 0
    %s12 = scalar_lea.sflag [#allocation4], 1
    %13 = vsyncpa %s12, 0
    loop: start=0, step=1, limit=4
    $region2: #{tpu_custom_call.1} parent=1 // loop_pre_header
      _
    $region3: #{tpu_custom_call.1} parent=1 // loop_header
      %s15 = sphi 0, %s19
      %p16 = scmp.ge.s32.totalorder %s15, 4
      %s25 = sphi 0, %s27
      %s28 = sphi 0, %s25
      %s29 = sphi 0, %s28
      %s45 = sphi 0, %s29
      %s49 = sphi 0, %s49
      %s51 = sphi 0, %s49
      %s52 = sphi 0, %s51
      %s66 = sphi 0, %s52
      %s72 = sphi 0, %s74
      %s75 = sphi 0, %s72
      %s76 = sphi 0, %s75
      %s92 = sphi 0, %s76
    $region4: #{tpu_custom_call.1} parent=1 // loop_header_branch
      %18 = sbr.rel (%p16) target = $region8
    $region5: #{tpu_custom_call.1} parent=1 // loop_body
      %s20 = ssub.s32 %s15, 1
      %s21 = ssub.s32 %s15, 2
      %s22 = sadd.s32 %s15, 1
      %s23 = ssub.s32 %s15, %s22
      %p24 = scmp.eq.s32.totalorder %s23, 0
      %s26 = sadd.s32 %s25, 1
      %s27 = scalar_select %p24, %s25, %s26
      %p30 = pneg %p24
      %p31 = scmp.eq.s32.totalorder %s15, 1
      %p32 = por %p30, %p31
      %p33 = scmp.ne.s32.totalorder %s25, %s28
      %p34 = scmp.eq.s32.totalorder %s15, 0
      %p35 = por %p33, %p34
      %p36 = scmp.ne.s32.totalorder %s25, %s28
      %p37 = scmp.eq.s32.totalorder %s20, 1
      %p38 = por %p36, %p37
      %p39 = scmp.ne.s32.totalorder %s28, %s29
      %p40 = scmp.eq.s32.totalorder %s20, 0
      %p41 = por %p39, %p40
      %p42 = scmp.ne.s32.totalorder %s28, %s29
      %p43 = scmp.eq.s32.totalorder %s21, 1
      %p44 = por %p42, %p43
      %p46 = scmp.ne.s32.totalorder %s29, %s45
      %p47 = scmp.eq.s32.totalorder %s21, 0
      %p48 = por %p46, %p47
      %s50 = sadd.s32 %s49, 1
      %p53 = scmp.eq.s32.totalorder %s15, 1
      %p54 = scmp.ne.s32.totalorder %s49, %s51
      %p55 = scmp.eq.s32.totalorder %s15, 0
      %p56 = por %p54, %p55
      %p57 = scmp.ne.s32.totalorder %s49, %s51
      %p58 = scmp.eq.s32.totalorder %s20, 1
      %p59 = por %p57, %p58
      %p60 = scmp.ne.s32.totalorder %s51, %s52
      %p61 = scmp.eq.s32.totalorder %s20, 0
      %p62 = por %p60, %p61
      %p63 = scmp.ne.s32.totalorder %s51, %s52
      %p64 = scmp.eq.s32.totalorder %s21, 1
      %p65 = por %p63, %p64
      %p67 = scmp.ne.s32.totalorder %s52, %s66
      %p68 = scmp.eq.s32.totalorder %s21, 0
      %p69 = por %p67, %p68
      %s70 = ssub.s32 %s15, %s22
      %p71 = scmp.eq.s32.totalorder %s70, 0
      %s73 = sadd.s32 %s72, 1
      %s74 = scalar_select %p71, %s72, %s73
      %p77 = pneg %p71
      %p78 = scmp.eq.s32.totalorder %s15, 1
      %p79 = por %p77, %p78
      %p80 = scmp.ne.s32.totalorder %s72, %s75
      %p81 = scmp.eq.s32.totalorder %s15, 0
      %p82 = por %p80, %p81
      %p83 = scmp.ne.s32.totalorder %s72, %s75
      %p84 = scmp.eq.s32.totalorder %s20, 1
      %p85 = por %p83, %p84
      %p86 = scmp.ne.s32.totalorder %s75, %s76
      %p87 = scmp.eq.s32.totalorder %s20, 0
      %p88 = por %p86, %p87
      %p89 = scmp.ne.s32.totalorder %s75, %s76
      %p90 = scmp.eq.s32.totalorder %s21, 1
      %p91 = por %p89, %p90
      %p93 = scmp.ne.s32.totalorder %s76, %s92
      %p94 = scmp.eq.s32.totalorder %s21, 0
      %p95 = por %p93, %p94
      %p96 = scmp.le.s32.totalorder 1, %s15
      %p97 = scmp.lt.s32.totalorder %s15, 3
      %p98 = pnand %p96, %p97
      %p99 = pneg %p98
      // Predicated region
      $region9: #{tpu_custom_call.1} parent=5 // pred_check
        _
      $region10: #{tpu_custom_call.1} parent=5 // pred_check_branch
        %101 = sbr.rel (%p98) target = $region12
      $region11: #{tpu_custom_call.1} parent=5 // pred_region
        %s102 = ssub.s32 %s15, 1
        // Predicated region
        $region13: #{tpu_custom_call.1} parent=11 // pred_check
          %p103 = pneg %p62
        $region14: #{tpu_custom_call.1} parent=11 // pred_check_branch
          %105 = sbr.rel (%p103) target = $region16
        $region15: #{tpu_custom_call.1} parent=11 // pred_region
          %s107 = ssub.s32 12544, 12544
          %108 = vsyncadd [#allocation6], %s107
          %s109 = sshll.u32 [#allocation5], 4
          %s110 = int_to_ptr.vmem [resolvable:$true] %s109
          %115 = dma.hbm_to_vmem [thread:$0]  %s1, 12544, %s110, [#allocation6], 128, 128, 8
        $region16: #{tpu_custom_call.1} parent=11 // pred_fallthru
          _
      $region12: #{tpu_custom_call.1} parent=5 // pred_fallthru
        _
      %p116 = scmp.lt.s32.totalorder %s15, 2
      // Predicated region
      $region17: #{tpu_custom_call.1} parent=5 // pred_check
        %p117 = pneg %p116
      $region18: #{tpu_custom_call.1} parent=5 // pred_check_branch
        %119 = sbr.rel (%p117) target = $region20
      $region19: #{tpu_custom_call.1} parent=5 // pred_region
        // Predicated region
        $region21: #{tpu_custom_call.1} parent=19 // pred_check
          %p120 = pneg %p35
        $region22: #{tpu_custom_call.1} parent=19 // pred_check_branch
          %122 = sbr.rel (%p120) target = $region24
        $region23: #{tpu_custom_call.1} parent=19 // pred_region
          %s123 = sand.u32 %s25, 1
          %s124 = scalar_lea.sflag [#allocation3], %s123
          %s125 = sand.u32 %s25, 1
          %s126 = smul.addr %s125, 32
          %s127 = scalar_lea.vmem [#allocation2], %s126
          %s128 = smul.u32 4, %s15
          %s130 = ssub.s32 512, 512
          %131 = vsyncadd %s124, %s130
          %s132 = smul.addr %s128, 128
          %s133 = scalar_lea.hbm %s0, %s132
          %s134 = sshll.u32 %s127, 4
          %s135 = int_to_ptr.vmem [resolvable:$true] %s134
          %140 = dma.hbm_to_vmem [thread:$0]  %s133, 512, %s135, %s124, 128, 128, 8
        $region24: #{tpu_custom_call.1} parent=19 // pred_fallthru
          _
      $region20: #{tpu_custom_call.1} parent=5 // pred_fallthru
        _
      %p141 = scmp.le.s32.totalorder 1, %s15
      %p142 = scmp.lt.s32.totalorder %s15, 3
      %p143 = pnand %p141, %p142
      %p144 = pneg %p143
      // Predicated region
      $region25: #{tpu_custom_call.1} parent=5 // pred_check
        _
      $region26: #{tpu_custom_call.1} parent=5 // pred_check_branch
        %146 = sbr.rel (%p143) target = $region28
      $region27: #{tpu_custom_call.1} parent=5 // pred_region
        %s147 = ssub.s32 %s15, 1
        %s148 = sand.u32 %s28, 1
        %s149 = scalar_lea.sflag [#allocation3], %s148
        %s150 = sand.u32 %s28, 1
        %s151 = smul.addr %s150, 32
        %s152 = scalar_lea.vmem [#allocation2], %s151
        // Predicated region
        $region29: #{tpu_custom_call.1} parent=27 // pred_check
          %p153 = pneg %p41
        $region30: #{tpu_custom_call.1} parent=27 // pred_check_branch
          %155 = sbr.rel (%p153) target = $region32
        $region31: #{tpu_custom_call.1} parent=27 // pred_region
          %156 = dma.done %s149, 512
        $region32: #{tpu_custom_call.1} parent=27 // pred_fallthru
          _
        // Predicated region
        $region33: #{tpu_custom_call.1} parent=27 // pred_check
          %p157 = pneg %p62
        $region34: #{tpu_custom_call.1} parent=27 // pred_check_branch
          %159 = sbr.rel (%p157) target = $region36
        $region35: #{tpu_custom_call.1} parent=27 // pred_region
          %160 = dma.done [#allocation6], 12544
        $region36: #{tpu_custom_call.1} parent=27 // pred_fallthru
          _
        %s161 = sand.u32 %s28, 1
        %s162 = scalar_lea.sflag [#allocation3], %s161
        %s163 = sand.u32 %s28, 1
        %s164 = smul.addr %s163, 32
        %s165 = scalar_lea.vmem [#allocation2], %s164
        %p166 = pneg %p41
        %p167 = pneg %p38
        %p168 = pneg %p62
        %p169 = pneg %p59
        %p170 = pneg %p88
        %p171 = pneg %p85
        %s172 = sand.u32 %s75, 1
        %s173 = scalar_lea.sflag [#allocation4], %s172
        %s174 = sand.u32 %s75, 1
        %s175 = smul.addr %s174, 32
        %s176 = scalar_lea.vmem [#allocation7], %s175
        %s177 = smul.u32 4, %s20
        %s178 = smul.u32 4, %s20
        %v179 = vld [vmem:[#allocation5 + $0x300] sm:$0xff]
        %v180 = vld [vmem:[%s152] sm:$0xff]
        %v181 = vld [vmem:[%s152 + $0x8] sm:$0xff]
        %v182 = vld [vmem:[%s152 + $0x10] sm:$0xff]
        %v183 = vld [vmem:[%s152 + $0x18] sm:$0xff]
        %v184 = vld [vmem:[#allocation5] sm:$0xff]
        %v185 = vld [vmem:[#allocation5 + $0x8] sm:$0xff]
        %v186 = vld [vmem:[#allocation5 + $0x10] sm:$0xff]
        %v187 = vld [vmem:[#allocation5 + $0x18] sm:$0xff]
        %v188 = vld [vmem:[#allocation5 + $0x20] sm:$0xff]
        %v189 = vld [vmem:[#allocation5 + $0x28] sm:$0xff]
        %v190 = vld [vmem:[#allocation5 + $0x30] sm:$0xff]
        %v191 = vld [vmem:[#allocation5 + $0x38] sm:$0xff]
        %v192 = vld [vmem:[#allocation5 + $0x40] sm:$0xff]
        %v193 = vld [vmem:[#allocation5 + $0x48] sm:$0xff]
        %v194 = vld [vmem:[#allocation5 + $0x50] sm:$0xff]
        %v195 = vld [vmem:[#allocation5 + $0x58] sm:$0xff]
        %v196 = vld [vmem:[#allocation5 + $0x60] sm:$0xff]
        %v197 = vld [vmem:[#allocation5 + $0x68] sm:$0xff]
        %v198 = vld [vmem:[#allocation5 + $0x70] sm:$0xff]
        %v199 = vld [vmem:[#allocation5 + $0x78] sm:$0xff]
        %v200 = vlaneseq
        %v201 = vshrl.u32 %v200, 7
        %v202 = vsub.s32 0, %v201
        %v203 = vrot.slane %v179, %v202
        %204 = vmatprep.subr.mxu0 0.0
        %205 = vmatpush1.msra.mxu0 %v184
        %206 = vmatprep.subr.mxu0 0.0
        %207 = vmatpush1.msra.mxu0 %v185
        %208 = vmatprep.subr.mxu0 0.0
        %209 = vmatpush1.msra.mxu0 %v186
        %210 = vmatprep.subr.mxu0 0.0
        %211 = vmatpush1.msra.mxu0 %v187
        %212 = vmatprep.subr.mxu0 0.0
        %213 = vmatpush1.msra.mxu0 %v188
        %214 = vmatprep.subr.mxu0 0.0
        %215 = vmatpush1.msra.mxu0 %v189
        %216 = vmatprep.subr.mxu0 0.0
        %217 = vmatpush1.msra.mxu0 %v190
        %218 = vmatprep.subr.mxu0 0.0
        %219 = vmatpush1.msra.mxu0 %v191
        %220 = vmatprep.subr.mxu0 0.0
        %221 = vmatpush1.msra.mxu0 %v192
        %222 = vmatprep.subr.mxu0 0.0
        %223 = vmatpush1.msra.mxu0 %v193
        %224 = vmatprep.subr.mxu0 0.0
        %225 = vmatpush1.msra.mxu0 %v194
        %226 = vmatprep.subr.mxu0 0.0
        %227 = vmatpush1.msra.mxu0 %v195
        %228 = vmatprep.subr.mxu0 0.0
        %229 = vmatpush1.msra.mxu0 %v196
        %230 = vmatprep.subr.mxu0 0.0
        %231 = vmatpush1.msra.mxu0 %v197
        %232 = vmatprep.subr.mxu0 0.0
        %233 = vmatpush1.msra.mxu0 %v198
        %234 = vmatprep.subr.mxu0 0.0
        %235 = vmatpush1.msra.mxu0 %v199
        %236 = vmatprep.subr.mxu0 0.0
        %237 = vmatpush1.msra.mxu0 0.0
        %238 = vmatprep.subr.mxu0 0.0
        %239 = vmatpush1.msra.mxu0 0.0
        %240 = vmatprep.subr.mxu0 0.0
        %241 = vmatpush1.msra.mxu0 0.0
        %242 = vmatprep.subr.mxu0 0.0
        %243 = vmatpush1.msra.mxu0 0.0
        %244 = vmatprep.subr.mxu0 0.0
        %245 = vmatpush1.msra.mxu0 0.0
        %246 = vmatprep.subr.mxu0 0.0
        %247 = vmatpush1.msra.mxu0 0.0
        %248 = vmatprep.subr.mxu0 0.0
        %249 = vmatpush1.msra.mxu0 0.0
        %250 = vmatprep.subr.mxu0 0.0
        %251 = vmatpush1.msra.mxu0 0.0
        %252 = vmatprep.subr.mxu0 0.0
        %253 = vmatpush1.msra.mxu0 0.0
        %254 = vmatprep.subr.mxu0 0.0
        %255 = vmatpush1.msra.mxu0 0.0
        %256 = vmatprep.subr.mxu0 0.0
        %257 = vmatpush1.msra.mxu0 0.0
        %258 = vmatprep.subr.mxu0 0.0
        %259 = vmatpush1.msra.mxu0 0.0
        %260 = vmatprep.subr.mxu0 0.0
        %261 = vmatpush1.msra.mxu0 0.0
        %262 = vmatprep.subr.mxu0 0.0
        %263 = vmatpush1.msra.mxu0 0.0
        %264 = vmatprep.subr.mxu0 0.0
        %265 = vmatpush1.msra.mxu0 0.0
        %266 = vmatprep.subr.mxu0 0.0
        %267 = vmatpush1.msra.mxu0 0.0
        %268 = vmatprep.mubr.f32.mxu0 0.0
        %269 = vmatmul.mubr.f32.gmra.mrb[0].mxu0 %v180
        %v270 = vpop.f32.mrb[0].mxu0
        %v271 = vadd.f32 %v203, %v270
        %v272 = vpop.f32.mrb[0].mxu0
        %273 = vmatprep.mubr.f32.mxu0 0.0
        %274 = vmatmul.mubr.f32.gmra.mrb[0].mxu0 %v181
        %v275 = vpop.f32.mrb[0].mxu0
        %v276 = vadd.f32 %v203, %v275
        %v277 = vpop.f32.mrb[0].mxu0
        %278 = vmatprep.mubr.f32.mxu0 0.0
        %279 = vmatmul.mubr.f32.gmra.mrb[0].mxu0 %v182
        %v280 = vpop.f32.mrb[0].mxu0
        %v281 = vadd.f32 %v203, %v280
        %v282 = vpop.f32.mrb[0].mxu0
        %283 = vmatprep.mubr.f32.mxu0 0.0
        %284 = vmatmul.mubr.f32.gmra.mrb[0].mxu0 %v183
        %v285 = vpop.f32.mrb[0].mxu0
        %v286 = vadd.f32 %v203, %v285
        %v287 = vpop.f32.mrb[0].mxu0
        %288 = vdwg.mxu0
        %v289 = vmax.f32 %v271, 0.0
        %v290 = vmax.f32 %v276, 0.0
        %v291 = vmax.f32 %v281, 0.0
        %v292 = vmax.f32 %v286, 0.0
        %v293 = vld [vmem:[#allocation5 + $0x80] sm:$0xff]
        %v294 = vld [vmem:[#allocation5 + $0x88] sm:$0xff]
        %v295 = vld [vmem:[#allocation5 + $0x90] sm:$0xff]
        %v296 = vld [vmem:[#allocation5 + $0x98] sm:$0xff]
        %v297 = vld [vmem:[#allocation5 + $0xa0] sm:$0xff]
        %v298 = vld [vmem:[#allocation5 + $0xa8] sm:$0xff]
        %v299 = vld [vmem:[#allocation5 + $0xb0] sm:$0xff]
        %v300 = vld [vmem:[#allocation5 + $0xb8] sm:$0xff]
        %v301 = vld [vmem:[#allocation5 + $0xc0] sm:$0xff]
        %v302 = vld [vmem:[#allocation5 + $0xc8] sm:$0xff]
        %v303 = vld [vmem:[#allocation5 + $0xd0] sm:$0xff]
        %v304 = vld [vmem:[#allocation5 + $0xd8] sm:$0xff]
        %v305 = vld [vmem:[#allocation5 + $0xe0] sm:$0xff]
        %v306 = vld [vmem:[#allocation5 + $0xe8] sm:$0xff]
        %v307 = vld [vmem:[#allocation5 + $0xf0] sm:$0xff]
        %v308 = vld [vmem:[#allocation5 + $0xf8] sm:$0xff]
        %v309 = vlaneseq
        %v310 = vshrl.u32 %v309, 7
        %v311 = vsub.s32 1, %v310
        %v312 = vrot.slane %v179, %v311
        %313 = vmatprep.subr.mxu0 0.0
        %314 = vmatpush1.msra.mxu0 %v293
        %315 = vmatprep.subr.mxu0 0.0
        %316 = vmatpush1.msra.mxu0 %v294
        %317 = vmatprep.subr.mxu0 0.0
        %318 = vmatpush1.msra.mxu0 %v295
        %319 = vmatprep.subr.mxu0 0.0
        %320 = vmatpush1.msra.mxu0 %v296
        %321 = vmatprep.subr.mxu0 0.0
        %322 = vmatpush1.msra.mxu0 %v297
        %323 = vmatprep.subr.mxu0 0.0
        %324 = vmatpush1.msra.mxu0 %v298
        %325 = vmatprep.subr.mxu0 0.0
        %326 = vmatpush1.msra.mxu0 %v299
        %327 = vmatprep.subr.mxu0 0.0
        %328 = vmatpush1.msra.mxu0 %v300
        %329 = vmatprep.subr.mxu0 0.0
        %330 = vmatpush1.msra.mxu0 %v301
        %331 = vmatprep.subr.mxu0 0.0
        %332 = vmatpush1.msra.mxu0 %v302
        %333 = vmatprep.subr.mxu0 0.0
        %334 = vmatpush1.msra.mxu0 %v303
        %335 = vmatprep.subr.mxu0 0.0
        %336 = vmatpush1.msra.mxu0 %v304
        %337 = vmatprep.subr.mxu0 0.0
        %338 = vmatpush1.msra.mxu0 %v305
        %339 = vmatprep.subr.mxu0 0.0
        %340 = vmatpush1.msra.mxu0 %v306
        %341 = vmatprep.subr.mxu0 0.0
        %342 = vmatpush1.msra.mxu0 %v307
        %343 = vmatprep.subr.mxu0 0.0
        %344 = vmatpush1.msra.mxu0 %v308
        %345 = vmatprep.subr.mxu0 0.0
        %346 = vmatpush1.msra.mxu0 0.0
        %347 = vmatprep.subr.mxu0 0.0
        %348 = vmatpush1.msra.mxu0 0.0
        %349 = vmatprep.subr.mxu0 0.0
        %350 = vmatpush1.msra.mxu0 0.0
        %351 = vmatprep.subr.mxu0 0.0
        %352 = vmatpush1.msra.mxu0 0.0
        %353 = vmatprep.subr.mxu0 0.0
        %354 = vmatpush1.msra.mxu0 0.0
        %355 = vmatprep.subr.mxu0 0.0
        %356 = vmatpush1.msra.mxu0 0.0
        %357 = vmatprep.subr.mxu0 0.0
        %358 = vmatpush1.msra.mxu0 0.0
        %359 = vmatprep.subr.mxu0 0.0
        %360 = vmatpush1.msra.mxu0 0.0
        %361 = vmatprep.subr.mxu0 0.0
        %362 = vmatpush1.msra.mxu0 0.0
        %363 = vmatprep.subr.mxu0 0.0
        %364 = vmatpush1.msra.mxu0 0.0
        %365 = vmatprep.subr.mxu0 0.0
        %366 = vmatpush1.msra.mxu0 0.0
        %367 = vmatprep.subr.mxu0 0.0
        %368 = vmatpush1.msra.mxu0 0.0
        %369 = vmatprep.subr.mxu0 0.0
        %370 = vmatpush1.msra.mxu0 0.0
        %371 = vmatprep.subr.mxu0 0.0
        %372 = vmatpush1.msra.mxu0 0.0
        %373 = vmatprep.subr.mxu0 0.0
        %374 = vmatpush1.msra.mxu0 0.0
        %375 = vmatprep.subr.mxu0 0.0
        %376 = vmatpush1.msra.mxu0 0.0
        %377 = vmatprep.mubr.f32.mxu0 0.0
        %378 = vmatmul.mubr.f32.gmra.mrb[0].mxu0 %v289
        %v379 = vpop.f32.mrb[0].mxu0
        %v380 = vadd.f32 %v312, %v379
        %v381 = vpop.f32.mrb[0].mxu0
        %382 = vmatprep.mubr.f32.mxu0 0.0
        %383 = vmatmul.mubr.f32.gmra.mrb[0].mxu0 %v290
        %v384 = vpop.f32.mrb[0].mxu0
        %v385 = vadd.f32 %v312, %v384
        %v386 = vpop.f32.mrb[0].mxu0
        %387 = vmatprep.mubr.f32.mxu0 0.0
        %388 = vmatmul.mubr.f32.gmra.mrb[0].mxu0 %v291
        %v389 = vpop.f32.mrb[0].mxu0
        %v390 = vadd.f32 %v312, %v389
        %v391 = vpop.f32.mrb[0].mxu0
        %392 = vmatprep.mubr.f32.mxu0 0.0
        %393 = vmatmul.mubr.f32.gmra.mrb[0].mxu0 %v292
        %v394 = vpop.f32.mrb[0].mxu0
        %v395 = vadd.f32 %v312, %v394
        %v396 = vpop.f32.mrb[0].mxu0
        %397 = vdwg.mxu0
        %v398 = vmax.f32 %v380, 0.0
        %v399 = vmax.f32 %v385, 0.0
        %v400 = vmax.f32 %v390, 0.0
        %v401 = vmax.f32 %v395, 0.0
        %v402 = vld [vmem:[#allocation5 + $0x100] sm:$0xff]
        %v403 = vld [vmem:[#allocation5 + $0x108] sm:$0xff]
        %v404 = vld [vmem:[#allocation5 + $0x110] sm:$0xff]
        %v405 = vld [vmem:[#allocation5 + $0x118] sm:$0xff]
        %v406 = vld [vmem:[#allocation5 + $0x120] sm:$0xff]
        %v407 = vld [vmem:[#allocation5 + $0x128] sm:$0xff]
        %v408 = vld [vmem:[#allocation5 + $0x130] sm:$0xff]
        %v409 = vld [vmem:[#allocation5 + $0x138] sm:$0xff]
        %v410 = vld [vmem:[#allocation5 + $0x140] sm:$0xff]
        %v411 = vld [vmem:[#allocation5 + $0x148] sm:$0xff]
        %v412 = vld [vmem:[#allocation5 + $0x150] sm:$0xff]
        %v413 = vld [vmem:[#allocation5 + $0x158] sm:$0xff]
        %v414 = vld [vmem:[#allocation5 + $0x160] sm:$0xff]
        %v415 = vld [vmem:[#allocation5 + $0x168] sm:$0xff]
        %v416 = vld [vmem:[#allocation5 + $0x170] sm:$0xff]
        %v417 = vld [vmem:[#allocation5 + $0x178] sm:$0xff]
        %v418 = vlaneseq
        %v419 = vshrl.u32 %v418, 7
        %v420 = vsub.s32 2, %v419
        %v421 = vrot.slane %v179, %v420
        %422 = vmatprep.subr.mxu0 0.0
        %423 = vmatpush1.msra.mxu0 %v402
        %424 = vmatprep.subr.mxu0 0.0
        %425 = vmatpush1.msra.mxu0 %v403
        %426 = vmatprep.subr.mxu0 0.0
        %427 = vmatpush1.msra.mxu0 %v404
        %428 = vmatprep.subr.mxu0 0.0
        %429 = vmatpush1.msra.mxu0 %v405
        %430 = vmatprep.subr.mxu0 0.0
        %431 = vmatpush1.msra.mxu0 %v406
        %432 = vmatprep.subr.mxu0 0.0
        %433 = vmatpush1.msra.mxu0 %v407
        %434 = vmatprep.subr.mxu0 0.0
        %435 = vmatpush1.msra.mxu0 %v408
        %436 = vmatprep.subr.mxu0 0.0
        %437 = vmatpush1.msra.mxu0 %v409
        %438 = vmatprep.subr.mxu0 0.0
        %439 = vmatpush1.msra.mxu0 %v410
        %440 = vmatprep.subr.mxu0 0.0
        %441 = vmatpush1.msra.mxu0 %v411
        %442 = vmatprep.subr.mxu0 0.0
        %443 = vmatpush1.msra.mxu0 %v412
        %444 = vmatprep.subr.mxu0 0.0
        %445 = vmatpush1.msra.mxu0 %v413
        %446 = vmatprep.subr.mxu0 0.0
        %447 = vmatpush1.msra.mxu0 %v414
        %448 = vmatprep.subr.mxu0 0.0
        %449 = vmatpush1.msra.mxu0 %v415
        %450 = vmatprep.subr.mxu0 0.0
        %451 = vmatpush1.msra.mxu0 %v416
        %452 = vmatprep.subr.mxu0 0.0
        %453 = vmatpush1.msra.mxu0 %v417
        %454 = vmatprep.subr.mxu0 0.0
        %455 = vmatpush1.msra.mxu0 0.0
        %456 = vmatprep.subr.mxu0 0.0
        %457 = vmatpush1.msra.mxu0 0.0
        %458 = vmatprep.subr.mxu0 0.0
        %459 = vmatpush1.msra.mxu0 0.0
        %460 = vmatprep.subr.mxu0 0.0
        %461 = vmatpush1.msra.mxu0 0.0
        %462 = vmatprep.subr.mxu0 0.0
        %463 = vmatpush1.msra.mxu0 0.0
        %464 = vmatprep.subr.mxu0 0.0
        %465 = vmatpush1.msra.mxu0 0.0
        %466 = vmatprep.subr.mxu0 0.0
        %467 = vmatpush1.msra.mxu0 0.0
        %468 = vmatprep.subr.mxu0 0.0
        %469 = vmatpush1.msra.mxu0 0.0
        %470 = vmatprep.subr.mxu0 0.0
        %471 = vmatpush1.msra.mxu0 0.0
        %472 = vmatprep.subr.mxu0 0.0
        %473 = vmatpush1.msra.mxu0 0.0
        %474 = vmatprep.subr.mxu0 0.0
        %475 = vmatpush1.msra.mxu0 0.0
        %476 = vmatprep.subr.mxu0 0.0
        %477 = vmatpush1.msra.mxu0 0.0
        %478 = vmatprep.subr.mxu0 0.0
        %479 = vmatpush1.msra.mxu0 0.0
        %480 = vmatprep.subr.mxu0 0.0
        %481 = vmatpush1.msra.mxu0 0.0
        %482 = vmatprep.subr.mxu0 0.0
        %483 = vmatpush1.msra.mxu0 0.0
        %484 = vmatprep.subr.mxu0 0.0
        %485 = vmatpush1.msra.mxu0 0.0
        %486 = vmatprep.mubr.f32.mxu0 0.0
        %487 = vmatmul.mubr.f32.gmra.mrb[0].mxu0 %v398
        %v488 = vpop.f32.mrb[0].mxu0
        %v489 = vadd.f32 %v421, %v488
        %v490 = vpop.f32.mrb[0].mxu0
        %491 = vmatprep.mubr.f32.mxu0 0.0
        %492 = vmatmul.mubr.f32.gmra.mrb[0].mxu0 %v399
        %v493 = vpop.f32.mrb[0].mxu0
        %v494 = vadd.f32 %v421, %v493
        %v495 = vpop.f32.mrb[0].mxu0
        %496 = vmatprep.mubr.f32.mxu0 0.0
        %497 = vmatmul.mubr.f32.gmra.mrb[0].mxu0 %v400
        %v498 = vpop.f32.mrb[0].mxu0
        %v499 = vadd.f32 %v421, %v498
        %v500 = vpop.f32.mrb[0].mxu0
        %501 = vmatprep.mubr.f32.mxu0 0.0
        %502 = vmatmul.mubr.f32.gmra.mrb[0].mxu0 %v401
        %v503 = vpop.f32.mrb[0].mxu0
        %v504 = vadd.f32 %v421, %v503
        %v505 = vpop.f32.mrb[0].mxu0
        %506 = vdwg.mxu0
        %v507 = vld [vmem:[#allocation5 + $0x180] sm:$0xff]
        %v508 = vld [vmem:[#allocation5 + $0x188] sm:$0xff]
        %v509 = vld [vmem:[#allocation5 + $0x190] sm:$0xff]
        %v510 = vld [vmem:[#allocation5 + $0x198] sm:$0xff]
        %v511 = vld [vmem:[#allocation5 + $0x1a0] sm:$0xff]
        %v512 = vld [vmem:[#allocation5 + $0x1a8] sm:$0xff]
        %v513 = vld [vmem:[#allocation5 + $0x1b0] sm:$0xff]
        %v514 = vld [vmem:[#allocation5 + $0x1b8] sm:$0xff]
        %v515 = vld [vmem:[#allocation5 + $0x1c0] sm:$0xff]
        %v516 = vld [vmem:[#allocation5 + $0x1c8] sm:$0xff]
        %v517 = vld [vmem:[#allocation5 + $0x1d0] sm:$0xff]
        %v518 = vld [vmem:[#allocation5 + $0x1d8] sm:$0xff]
        %v519 = vld [vmem:[#allocation5 + $0x1e0] sm:$0xff]
        %v520 = vld [vmem:[#allocation5 + $0x1e8] sm:$0xff]
        %v521 = vld [vmem:[#allocation5 + $0x1f0] sm:$0xff]
        %v522 = vld [vmem:[#allocation5 + $0x1f8] sm:$0xff]
        %v523 = vlaneseq
        %v524 = vshrl.u32 %v523, 7
        %v525 = vsub.s32 3, %v524
        %v526 = vrot.slane %v179, %v525
        %527 = vmatprep.subr.mxu0 0.0
        %528 = vmatpush1.msra.mxu0 %v507
        %529 = vmatprep.subr.mxu0 0.0
        %530 = vmatpush1.msra.mxu0 %v508
        %531 = vmatprep.subr.mxu0 0.0
        %532 = vmatpush1.msra.mxu0 %v509
        %533 = vmatprep.subr.mxu0 0.0
        %534 = vmatpush1.msra.mxu0 %v510
        %535 = vmatprep.subr.mxu0 0.0
        %536 = vmatpush1.msra.mxu0 %v511
        %537 = vmatprep.subr.mxu0 0.0
        %538 = vmatpush1.msra.mxu0 %v512
        %539 = vmatprep.subr.mxu0 0.0
        %540 = vmatpush1.msra.mxu0 %v513
        %541 = vmatprep.subr.mxu0 0.0
        %542 = vmatpush1.msra.mxu0 %v514
        %543 = vmatprep.subr.mxu0 0.0
        %544 = vmatpush1.msra.mxu0 %v515
        %545 = vmatprep.subr.mxu0 0.0
        %546 = vmatpush1.msra.mxu0 %v516
        %547 = vmatprep.subr.mxu0 0.0
        %548 = vmatpush1.msra.mxu0 %v517
        %549 = vmatprep.subr.mxu0 0.0
        %550 = vmatpush1.msra.mxu0 %v518
        %551 = vmatprep.subr.mxu0 0.0
        %552 = vmatpush1.msra.mxu0 %v519
        %553 = vmatprep.subr.mxu0 0.0
        %554 = vmatpush1.msra.mxu0 %v520
        %555 = vmatprep.subr.mxu0 0.0
        %556 = vmatpush1.msra.mxu0 %v521
        %557 = vmatprep.subr.mxu0 0.0
        %558 = vmatpush1.msra.mxu0 %v522
        %559 = vmatprep.subr.mxu0 0.0
        %560 = vmatpush1.msra.mxu0 0.0
        %561 = vmatprep.subr.mxu0 0.0
        %562 = vmatpush1.msra.mxu0 0.0
        %563 = vmatprep.subr.mxu0 0.0
        %564 = vmatpush1.msra.mxu0 0.0
        %565 = vmatprep.subr.mxu0 0.0
        %566 = vmatpush1.msra.mxu0 0.0
        %567 = vmatprep.subr.mxu0 0.0
        %568 = vmatpush1.msra.mxu0 0.0
        %569 = vmatprep.subr.mxu0 0.0
        %570 = vmatpush1.msra.mxu0 0.0
        %571 = vmatprep.subr.mxu0 0.0
        %572 = vmatpush1.msra.mxu0 0.0
        %573 = vmatprep.subr.mxu0 0.0
        %574 = vmatpush1.msra.mxu0 0.0
        %575 = vmatprep.subr.mxu0 0.0
        %576 = vmatpush1.msra.mxu0 0.0
        %577 = vmatprep.subr.mxu0 0.0
        %578 = vmatpush1.msra.mxu0 0.0
        %579 = vmatprep.subr.mxu0 0.0
        %580 = vmatpush1.msra.mxu0 0.0
        %581 = vmatprep.subr.mxu0 0.0
        %582 = vmatpush1.msra.mxu0 0.0
        %583 = vmatprep.subr.mxu0 0.0
        %584 = vmatpush1.msra.mxu0 0.0
        %585 = vmatprep.subr.mxu0 0.0
        %586 = vmatpush1.msra.mxu0 0.0
        %587 = vmatprep.subr.mxu0 0.0
        %588 = vmatpush1.msra.mxu0 0.0
        %589 = vmatprep.subr.mxu0 0.0
        %590 = vmatpush1.msra.mxu0 0.0
        %591 = vmatprep.mubr.f32.mxu0 0.0
        %592 = vmatmul.mubr.f32.gmra.mrb[0].mxu0 %v489
        %v593 = vpop.f32.mrb[0].mxu0
        %v594 = vadd.f32 %v526, %v593
        %v595 = vpop.f32.mrb[0].mxu0
        %596 = vmatprep.mubr.f32.mxu0 0.0
        %597 = vmatmul.mubr.f32.gmra.mrb[0].mxu0 %v494
        %v598 = vpop.f32.mrb[0].mxu0
        %v599 = vadd.f32 %v526, %v598
        %v600 = vpop.f32.mrb[0].mxu0
        %601 = vmatprep.mubr.f32.mxu0 0.0
        %602 = vmatmul.mubr.f32.gmra.mrb[0].mxu0 %v499
        %v603 = vpop.f32.mrb[0].mxu0
        %v604 = vadd.f32 %v526, %v603
        %v605 = vpop.f32.mrb[0].mxu0
        %606 = vmatprep.mubr.f32.mxu0 0.0
        %607 = vmatmul.mubr.f32.gmra.mrb[0].mxu0 %v504
        %v608 = vpop.f32.mrb[0].mxu0
        %v609 = vadd.f32 %v526, %v608
        %v610 = vpop.f32.mrb[0].mxu0
        %611 = vdwg.mxu0
        %v612 = vmax.f32 %v594, 0.0
        %v613 = vmax.f32 %v599, 0.0
        %v614 = vmax.f32 %v604, 0.0
        %v615 = vmax.f32 %v609, 0.0
        %v616 = vld [vmem:[#allocation5 + $0x200] sm:$0xff]
        %v617 = vld [vmem:[#allocation5 + $0x208] sm:$0xff]
        %v618 = vld [vmem:[#allocation5 + $0x210] sm:$0xff]
        %v619 = vld [vmem:[#allocation5 + $0x218] sm:$0xff]
        %v620 = vld [vmem:[#allocation5 + $0x220] sm:$0xff]
        %v621 = vld [vmem:[#allocation5 + $0x228] sm:$0xff]
        %v622 = vld [vmem:[#allocation5 + $0x230] sm:$0xff]
        %v623 = vld [vmem:[#allocation5 + $0x238] sm:$0xff]
        %v624 = vld [vmem:[#allocation5 + $0x240] sm:$0xff]
        %v625 = vld [vmem:[#allocation5 + $0x248] sm:$0xff]
        %v626 = vld [vmem:[#allocation5 + $0x250] sm:$0xff]
        %v627 = vld [vmem:[#allocation5 + $0x258] sm:$0xff]
        %v628 = vld [vmem:[#allocation5 + $0x260] sm:$0xff]
        %v629 = vld [vmem:[#allocation5 + $0x268] sm:$0xff]
        %v630 = vld [vmem:[#allocation5 + $0x270] sm:$0xff]
        %v631 = vld [vmem:[#allocation5 + $0x278] sm:$0xff]
        %v632 = vlaneseq
        %v633 = vshrl.u32 %v632, 7
        %v634 = vsub.s32 4, %v633
        %v635 = vrot.slane %v179, %v634
        %636 = vmatprep.subr.mxu0 0.0
        %637 = vmatpush1.msra.mxu0 %v616
        %638 = vmatprep.subr.mxu0 0.0
        %639 = vmatpush1.msra.mxu0 %v617
        %640 = vmatprep.subr.mxu0 0.0
        %641 = vmatpush1.msra.mxu0 %v618
        %642 = vmatprep.subr.mxu0 0.0
        %643 = vmatpush1.msra.mxu0 %v619
        %644 = vmatprep.subr.mxu0 0.0
        %645 = vmatpush1.msra.mxu0 %v620
        %646 = vmatprep.subr.mxu0 0.0
        %647 = vmatpush1.msra.mxu0 %v621
        %648 = vmatprep.subr.mxu0 0.0
        %649 = vmatpush1.msra.mxu0 %v622
        %650 = vmatprep.subr.mxu0 0.0
        %651 = vmatpush1.msra.mxu0 %v623
        %652 = vmatprep.subr.mxu0 0.0
        %653 = vmatpush1.msra.mxu0 %v624
        %654 = vmatprep.subr.mxu0 0.0
        %655 = vmatpush1.msra.mxu0 %v625
        %656 = vmatprep.subr.mxu0 0.0
        %657 = vmatpush1.msra.mxu0 %v626
        %658 = vmatprep.subr.mxu0 0.0
        %659 = vmatpush1.msra.mxu0 %v627
        %660 = vmatprep.subr.mxu0 0.0
        %661 = vmatpush1.msra.mxu0 %v628
        %662 = vmatprep.subr.mxu0 0.0
        %663 = vmatpush1.msra.mxu0 %v629
        %664 = vmatprep.subr.mxu0 0.0
        %665 = vmatpush1.msra.mxu0 %v630
        %666 = vmatprep.subr.mxu0 0.0
        %667 = vmatpush1.msra.mxu0 %v631
        %668 = vmatprep.subr.mxu0 0.0
        %669 = vmatpush1.msra.mxu0 0.0
        %670 = vmatprep.subr.mxu0 0.0
        %671 = vmatpush1.msra.mxu0 0.0
        %672 = vmatprep.subr.mxu0 0.0
        %673 = vmatpush1.msra.mxu0 0.0
        %674 = vmatprep.subr.mxu0 0.0
        %675 = vmatpush1.msra.mxu0 0.0
        %676 = vmatprep.subr.mxu0 0.0
        %677 = vmatpush1.msra.mxu0 0.0
        %678 = vmatprep.subr.mxu0 0.0
        %679 = vmatpush1.msra.mxu0 0.0
        %680 = vmatprep.subr.mxu0 0.0
        %681 = vmatpush1.msra.mxu0 0.0
        %682 = vmatprep.subr.mxu0 0.0
        %683 = vmatpush1.msra.mxu0 0.0
        %684 = vmatprep.subr.mxu0 0.0
        %685 = vmatpush1.msra.mxu0 0.0
        %686 = vmatprep.subr.mxu0 0.0
        %687 = vmatpush1.msra.mxu0 0.0
        %688 = vmatprep.subr.mxu0 0.0
        %689 = vmatpush1.msra.mxu0 0.0
        %690 = vmatprep.subr.mxu0 0.0
        %691 = vmatpush1.msra.mxu0 0.0
        %692 = vmatprep.subr.mxu0 0.0
        %693 = vmatpush1.msra.mxu0 0.0
        %694 = vmatprep.subr.mxu0 0.0
        %695 = vmatpush1.msra.mxu0 0.0
        %696 = vmatprep.subr.mxu0 0.0
        %697 = vmatpush1.msra.mxu0 0.0
        %698 = vmatprep.subr.mxu0 0.0
        %699 = vmatpush1.msra.mxu0 0.0
        %700 = vmatprep.mubr.f32.mxu0 0.0
        %701 = vmatmul.mubr.f32.gmra.mrb[0].mxu0 %v612
        %v702 = vpop.f32.mrb[0].mxu0
        %v703 = vadd.f32 %v635, %v702
        %v704 = vpop.f32.mrb[0].mxu0
        %705 = vmatprep.mubr.f32.mxu0 0.0
        %706 = vmatmul.mubr.f32.gmra.mrb[0].mxu0 %v613
        %v707 = vpop.f32.mrb[0].mxu0
        %v708 = vadd.f32 %v635, %v707
        %v709 = vpop.f32.mrb[0].mxu0
        %710 = vmatprep.mubr.f32.mxu0 0.0
        %711 = vmatmul.mubr.f32.gmra.mrb[0].mxu0 %v614
        %v712 = vpop.f32.mrb[0].mxu0
        %v713 = vadd.f32 %v635, %v712
        %v714 = vpop.f32.mrb[0].mxu0
        %715 = vmatprep.mubr.f32.mxu0 0.0
        %716 = vmatmul.mubr.f32.gmra.mrb[0].mxu0 %v615
        %v717 = vpop.f32.mrb[0].mxu0
        %v718 = vadd.f32 %v635, %v717
        %v719 = vpop.f32.mrb[0].mxu0
        %720 = vdwg.mxu0
        %v721 = vmax.f32 %v703, 0.0
        %v722 = vmax.f32 %v708, 0.0
        %v723 = vmax.f32 %v713, 0.0
        %v724 = vmax.f32 %v718, 0.0
        %v725 = vld [vmem:[#allocation5 + $0x280] sm:$0xff]
        %v726 = vld [vmem:[#allocation5 + $0x288] sm:$0xff]
        %v727 = vld [vmem:[#allocation5 + $0x290] sm:$0xff]
        %v728 = vld [vmem:[#allocation5 + $0x298] sm:$0xff]
        %v729 = vld [vmem:[#allocation5 + $0x2a0] sm:$0xff]
        %v730 = vld [vmem:[#allocation5 + $0x2a8] sm:$0xff]
        %v731 = vld [vmem:[#allocation5 + $0x2b0] sm:$0xff]
        %v732 = vld [vmem:[#allocation5 + $0x2b8] sm:$0xff]
        %v733 = vld [vmem:[#allocation5 + $0x2c0] sm:$0xff]
        %v734 = vld [vmem:[#allocation5 + $0x2c8] sm:$0xff]
        %v735 = vld [vmem:[#allocation5 + $0x2d0] sm:$0xff]
        %v736 = vld [vmem:[#allocation5 + $0x2d8] sm:$0xff]
        %v737 = vld [vmem:[#allocation5 + $0x2e0] sm:$0xff]
        %v738 = vld [vmem:[#allocation5 + $0x2e8] sm:$0xff]
        %v739 = vld [vmem:[#allocation5 + $0x2f0] sm:$0xff]
        %v740 = vld [vmem:[#allocation5 + $0x2f8] sm:$0xff]
        %v741 = vlaneseq
        %v742 = vshrl.u32 %v741, 7
        %v743 = vsub.s32 5, %v742
        %v744 = vrot.slane %v179, %v743
        %745 = vmatprep.subr.mxu0 0.0
        %746 = vmatpush1.msra.mxu0 %v725
        %747 = vmatprep.subr.mxu0 0.0
        %748 = vmatpush1.msra.mxu0 %v726
        %749 = vmatprep.subr.mxu0 0.0
        %750 = vmatpush1.msra.mxu0 %v727
        %751 = vmatprep.subr.mxu0 0.0
        %752 = vmatpush1.msra.mxu0 %v728
        %753 = vmatprep.subr.mxu0 0.0
        %754 = vmatpush1.msra.mxu0 %v729
        %755 = vmatprep.subr.mxu0 0.0
        %756 = vmatpush1.msra.mxu0 %v730
        %757 = vmatprep.subr.mxu0 0.0
        %758 = vmatpush1.msra.mxu0 %v731
        %759 = vmatprep.subr.mxu0 0.0
        %760 = vmatpush1.msra.mxu0 %v732
        %761 = vmatprep.subr.mxu0 0.0
        %762 = vmatpush1.msra.mxu0 %v733
        %763 = vmatprep.subr.mxu0 0.0
        %764 = vmatpush1.msra.mxu0 %v734
        %765 = vmatprep.subr.mxu0 0.0
        %766 = vmatpush1.msra.mxu0 %v735
        %767 = vmatprep.subr.mxu0 0.0
        %768 = vmatpush1.msra.mxu0 %v736
        %769 = vmatprep.subr.mxu0 0.0
        %770 = vmatpush1.msra.mxu0 %v737
        %771 = vmatprep.subr.mxu0 0.0
        %772 = vmatpush1.msra.mxu0 %v738
        %773 = vmatprep.subr.mxu0 0.0
        %774 = vmatpush1.msra.mxu0 %v739
        %775 = vmatprep.subr.mxu0 0.0
        %776 = vmatpush1.msra.mxu0 %v740
        %777 = vmatprep.subr.mxu0 0.0
        %778 = vmatpush1.msra.mxu0 0.0
        %779 = vmatprep.subr.mxu0 0.0
        %780 = vmatpush1.msra.mxu0 0.0
        %781 = vmatprep.subr.mxu0 0.0
        %782 = vmatpush1.msra.mxu0 0.0
        %783 = vmatprep.subr.mxu0 0.0
        %784 = vmatpush1.msra.mxu0 0.0
        %785 = vmatprep.subr.mxu0 0.0
        %786 = vmatpush1.msra.mxu0 0.0
        %787 = vmatprep.subr.mxu0 0.0
        %788 = vmatpush1.msra.mxu0 0.0
        %789 = vmatprep.subr.mxu0 0.0
        %790 = vmatpush1.msra.mxu0 0.0
        %791 = vmatprep.subr.mxu0 0.0
        %792 = vmatpush1.msra.mxu0 0.0
        %793 = vmatprep.subr.mxu0 0.0
        %794 = vmatpush1.msra.mxu0 0.0
        %795 = vmatprep.subr.mxu0 0.0
        %796 = vmatpush1.msra.mxu0 0.0
        %797 = vmatprep.subr.mxu0 0.0
        %798 = vmatpush1.msra.mxu0 0.0
        %799 = vmatprep.subr.mxu0 0.0
        %800 = vmatpush1.msra.mxu0 0.0
        %801 = vmatprep.subr.mxu0 0.0
        %802 = vmatpush1.msra.mxu0 0.0
        %803 = vmatprep.subr.mxu0 0.0
        %804 = vmatpush1.msra.mxu0 0.0
        %805 = vmatprep.subr.mxu0 0.0
        %806 = vmatpush1.msra.mxu0 0.0
        %807 = vmatprep.subr.mxu0 0.0
        %808 = vmatpush1.msra.mxu0 0.0
        %809 = vmatprep.mubr.f32.mxu0 0.0
        %810 = vmatmul.mubr.f32.gmra.mrb[0].mxu0 %v721
        %v811 = vpop.f32.mrb[0].mxu0
        %v812 = vadd.f32 %v744, %v811
        %v813 = vpop.f32.mrb[0].mxu0
        %814 = vmatprep.mubr.f32.mxu0 0.0
        %815 = vmatmul.mubr.f32.gmra.mrb[0].mxu0 %v722
        %v816 = vpop.f32.mrb[0].mxu0
        %v817 = vadd.f32 %v744, %v816
        %v818 = vpop.f32.mrb[0].mxu0
        %819 = vmatprep.mubr.f32.mxu0 0.0
        %820 = vmatmul.mubr.f32.gmra.mrb[0].mxu0 %v723
        %v821 = vpop.f32.mrb[0].mxu0
        %v822 = vadd.f32 %v744, %v821
        %v823 = vpop.f32.mrb[0].mxu0
        %824 = vmatprep.mubr.f32.mxu0 0.0
        %825 = vmatmul.mubr.f32.gmra.mrb[0].mxu0 %v724
        %v826 = vpop.f32.mrb[0].mxu0
        %v827 = vadd.f32 %v744, %v826
        %v828 = vpop.f32.mrb[0].mxu0
        %829 = vdwg.mxu0
        %v830 = vadd.f32 %v489, %v812
        %v831 = vadd.f32 %v494, %v817
        %v832 = vadd.f32 %v499, %v822
        %v833 = vadd.f32 %v504, %v827
        %834 = vst [vmem:[%s176] sm:$0xff] %v830
        %835 = vst [vmem:[%s176 + $0x8] sm:$0xff] %v831
        %836 = vst [vmem:[%s176 + $0x10] sm:$0xff] %v832
        %837 = vst [vmem:[%s176 + $0x18] sm:$0xff] %v833
        %s838 = sand.u32 %s75, 1
        %s839 = scalar_lea.sflag [#allocation4], %s838
        %s840 = sand.u32 %s75, 1
        %s841 = smul.addr %s840, 32
        %s842 = scalar_lea.vmem [#allocation7], %s841
        // Predicated region
        $region37: #{tpu_custom_call.1} parent=27 // pred_check
          %p843 = pneg %p85
        $region38: #{tpu_custom_call.1} parent=27 // pred_check_branch
          %845 = sbr.rel (%p843) target = $region40
        $region39: #{tpu_custom_call.1} parent=27 // pred_region
          %s846 = smul.u32 4, %s20
          %s848 = ssub.s32 512, 512
          %849 = vsyncadd %s839, %s848
          %s850 = smul.addr %s846, 128
          %s851 = scalar_lea.hbm %s2, %s850
          %s852 = sshll.u32 %s842, 4
          %s853 = int_to_ptr.vmem [resolvable:$true] %s852
          %858 = dma.vmem_to_hbm [thread:$0]  %s853, 512, %s851, %s839, 128, 128, 8
        $region40: #{tpu_custom_call.1} parent=27 // pred_fallthru
          _
      $region28: #{tpu_custom_call.1} parent=5 // pred_fallthru
        _
      %p859 = scmp.le.s32.totalorder 2, %s15
      // Predicated region
      $region41: #{tpu_custom_call.1} parent=5 // pred_check
        %p860 = pneg %p859
      $region42: #{tpu_custom_call.1} parent=5 // pred_check_branch
        %862 = sbr.rel (%p860) target = $region44
      $region43: #{tpu_custom_call.1} parent=5 // pred_region
        %s863 = ssub.s32 %s15, 2
        // Predicated region
        $region45: #{tpu_custom_call.1} parent=43 // pred_check
          %p864 = pneg %p91
        $region46: #{tpu_custom_call.1} parent=43 // pred_check_branch
          %866 = sbr.rel (%p864) target = $region48
        $region47: #{tpu_custom_call.1} parent=43 // pred_region
          %s867 = sand.u32 %s76, 1
          %s868 = scalar_lea.sflag [#allocation4], %s867
          %s869 = sand.u32 %s76, 1
          %s870 = smul.addr %s869, 32
          %s871 = scalar_lea.vmem [#allocation7], %s870
          %872 = dma.done %s868, 512
        $region48: #{tpu_custom_call.1} parent=43 // pred_fallthru
          _
      $region44: #{tpu_custom_call.1} parent=5 // pred_fallthru
        _
    $region6: #{tpu_custom_call.1} parent=1 // loop_footer
      %s19 = sadd.s32 1, %s15
    $region7: #{tpu_custom_call.1} parent=1 // loop_footer_branch
      %14 = sbr.rel target = $region3
    $region8: #{tpu_custom_call.1} parent=1 // loop_exit
      _
    %873 = vsyncpa [#allocation3], 1
    %s874 = scalar_lea.sflag [#allocation3], 1
    %875 = vsyncpa %s874, 1
    %876 = vsyncpa [#allocation6], 1
    %877 = vsyncpa [#allocation4], 1
    %s878 = scalar_lea.sflag [#allocation4], 1
    %879 = vsyncpa %s878, 1

// kernel: tpu_custom_call.1
$region0: #{tpu_custom_call.1}
  #allocation0 [shape = 'u32[]', space=smem, size = 0x4, offset = 0x4, fixed_abs, tag = 'smem constant byte address 0x4 - core index']
  #allocation1 [shape = 'u32[144,128]{1,0:T(1,128)}', space=vmem, size = 0x12000, scoped, tag = 'internal scratch']
  %s0 = inlined_call_operand.hbm [shape: f32[64,128], index: 0, kind: input, shape index: {}]
  %s1 = inlined_call_operand.hbm [shape: f32[784,128], index: 1, kind: input, shape index: {}]
  %s2 = inlined_call_operand.hbm [shape: f32[64,128], index: 2, kind: output, shape index: {}]
  %s3 = sld [smem:[#allocation0]]
  $region49: #{tpu_custom_call.1} parent=0
    _
  %s5 = ssub.s32 1, %s3
  %s6 = scalar_select 0, %s5, %s3
  $region1: #{tpu_custom_call.1} parent=0
    #allocation2 [shape = 'u8[32768]{0}', space=vmem, size = 0x8000, scoped, tag = 'input window, operand 0']
    #allocation3 [shape = 's32[2]{0}', space=sflag, size = 0x8, scoped, tag = 'scoped memory for tpu_custom_call.1']
    #allocation4 [shape = 's32[2]{0}', space=sflag, size = 0x8, scoped, tag = 'scoped memory for tpu_custom_call.1']
    #allocation5 [shape = 'u8[401408]{0}', space=vmem, size = 0x62000, scoped, tag = 'input window, operand 1, single buffered']
    #allocation6 [shape = 's32[1]{0}', space=sflag, size = 0x4, scoped, tag = 'scoped memory for tpu_custom_call.1']
    #allocation7 [shape = 'u8[32768]{0}', space=vmem, size = 0x8000, scoped, tag = 'output window, operand 0']
    %7 = vsyncpa [#allocation3], 0
    %s8 = scalar_lea.sflag [#allocation3], 1
    %9 = vsyncpa %s8, 0
    %10 = vsyncpa [#allocation6], 0
    %11 = vsyncpa [#allocation4], 0
    %s12 = scalar_lea.sflag [#allocation4], 1
    %13 = vsyncpa %s12, 0
    loop: start=0, step=1, limit=4
    $region2: #{tpu_custom_call.1} parent=1 // loop_pre_header
      _
    $region3: #{tpu_custom_call.1} parent=1 // loop_header
      %s15 = sphi 0, %s19
      %p16 = scmp.ge.s32.totalorder %s15, 4
      %s25 = sphi 0, %s27
      %s28 = sphi 0, %s25
      %s29 = sphi 0, %s28
      %s45 = sphi 0, %s29
      %s49 = sphi 0, %s49
      %s51 = sphi 0, %s49
      %s52 = sphi 0, %s51
      %s66 = sphi 0, %s52
      %s72 = sphi 0, %s74
      %s75 = sphi 0, %s72
      %s76 = sphi 0, %s75
      %s92 = sphi 0, %s76
    $region4: #{tpu_custom_call.1} parent=1 // loop_header_branch
      %18 = sbr.rel (%p16) target = $region8
    $region5: #{tpu_custom_call.1} parent=1 // loop_body
      %s20 = ssub.s32 %s15, 1
      %s21 = ssub.s32 %s15, 2
      %s22 = sadd.s32 %s15, 1
      %s23 = ssub.s32 %s15, %s22
      %p24 = scmp.eq.s32.totalorder %s23, 0
      %s26 = sadd.s32 %s25, 1
      %s27 = scalar_select %p24, %s25, %s26
      %p30 = pneg %p24
      %p31 = scmp.eq.s32.totalorder %s15, 1
      %p32 = por %p30, %p31
      %p33 = scmp.ne.s32.totalorder %s25, %s28
      %p34 = scmp.eq.s32.totalorder %s15, 0
      %p35 = por %p33, %p34
      %p36 = scmp.ne.s32.totalorder %s25, %s28
      %p37 = scmp.eq.s32.totalorder %s20, 1
      %p38 = por %p36, %p37
      %p39 = scmp.ne.s32.totalorder %s28, %s29
      %p40 = scmp.eq.s32.totalorder %s20, 0
      %p41 = por %p39, %p40
      %p42 = scmp.ne.s32.totalorder %s28, %s29
      %p43 = scmp.eq.s32.totalorder %s21, 1
      %p44 = por %p42, %p43
      %p46 = scmp.ne.s32.totalorder %s29, %s45
      %p47 = scmp.eq.s32.totalorder %s21, 0
      %p48 = por %p46, %p47
      %s50 = sadd.s32 %s49, 1
      %p53 = scmp.eq.s32.totalorder %s15, 1
      %p54 = scmp.ne.s32.totalorder %s49, %s51
      %p55 = scmp.eq.s32.totalorder %s15, 0
      %p56 = por %p54, %p55
      %p57 = scmp.ne.s32.totalorder %s49, %s51
      %p58 = scmp.eq.s32.totalorder %s20, 1
      %p59 = por %p57, %p58
      %p60 = scmp.ne.s32.totalorder %s51, %s52
      %p61 = scmp.eq.s32.totalorder %s20, 0
      %p62 = por %p60, %p61
      %p63 = scmp.ne.s32.totalorder %s51, %s52
      %p64 = scmp.eq.s32.totalorder %s21, 1
      %p65 = por %p63, %p64
      %p67 = scmp.ne.s32.totalorder %s52, %s66
      %p68 = scmp.eq.s32.totalorder %s21, 0
      %p69 = por %p67, %p68
      %s70 = ssub.s32 %s15, %s22
      %p71 = scmp.eq.s32.totalorder %s70, 0
      %s73 = sadd.s32 %s72, 1
      %s74 = scalar_select %p71, %s72, %s73
      %p77 = pneg %p71
      %p78 = scmp.eq.s32.totalorder %s15, 1
      %p79 = por %p77, %p78
      %p80 = scmp.ne.s32.totalorder %s72, %s75
      %p81 = scmp.eq.s32.totalorder %s15, 0
      %p82 = por %p80, %p81
      %p83 = scmp.ne.s32.totalorder %s72, %s75
      %p84 = scmp.eq.s32.totalorder %s20, 1
      %p85 = por %p83, %p84
      %p86 = scmp.ne.s32.totalorder %s75, %s76
      %p87 = scmp.eq.s32.totalorder %s20, 0
      %p88 = por %p86, %p87
      %p89 = scmp.ne.s32.totalorder %s75, %s76
      %p90 = scmp.eq.s32.totalorder %s21, 1
      %p91 = por %p89, %p90
      %p93 = scmp.ne.s32.totalorder %s76, %s92
      %p94 = scmp.eq.s32.totalorder %s21, 0
      %p95 = por %p93, %p94
      %p96 = scmp.le.s32.totalorder 1, %s15
      %p97 = scmp.lt.s32.totalorder %s15, 3
      %p98 = pnand %p96, %p97
      %p99 = pneg %p98
      // Predicated region
      $region9: #{tpu_custom_call.1} parent=5 // pred_check
        _
      $region10: #{tpu_custom_call.1} parent=5 // pred_check_branch
        %101 = sbr.rel (%p98) target = $region12
      $region11: #{tpu_custom_call.1} parent=5 // pred_region
        %s102 = ssub.s32 %s15, 1
        // Predicated region
        $region13: #{tpu_custom_call.1} parent=11 // pred_check
          %p103 = pneg %p62
        $region14: #{tpu_custom_call.1} parent=11 // pred_check_branch
          %105 = sbr.rel (%p103) target = $region16
        $region15: #{tpu_custom_call.1} parent=11 // pred_region
          %s107 = ssub.s32 12544, 12544
          %108 = vsyncadd [#allocation6], %s107
          %s109 = sshll.u32 [#allocation5], 4
          %s110 = int_to_ptr.vmem [resolvable:$true] %s109
          %115 = dma.hbm_to_vmem [thread:$0]  %s1, 12544, %s110, [#allocation6], 128, 128, 8
        $region16: #{tpu_custom_call.1} parent=11 // pred_fallthru
          _
      $region12: #{tpu_custom_call.1} parent=5 // pred_fallthru
        _
      %p116 = scmp.lt.s32.totalorder %s15, 2
      // Predicated region
      $region17: #{tpu_custom_call.1} parent=5 // pred_check
        %p117 = pneg %p116
      $region18: #{tpu_custom_call.1} parent=5 // pred_check_branch
        %119 = sbr.rel (%p117) target = $region20
      $region19: #{tpu_custom_call.1} parent=5 // pred_region
        // Predicated region
        $region21: #{tpu_custom_call.1} parent=19 // pred_check
          %p120 = pneg %p35
        $region22: #{tpu_custom_call.1} parent=19 // pred_check_branch
          %122 = sbr.rel (%p120) target = $region24
        $region23: #{tpu_custom_call.1} parent=19 // pred_region
          %s123 = sand.u32 %s25, 1
          %s124 = scalar_lea.sflag [#allocation3], %s123
          %s125 = sand.u32 %s25, 1
          %s126 = smul.addr %s125, 32
          %s127 = scalar_lea.vmem [#allocation2], %s126
          %s128 = smul.u32 4, %s15
          %s130 = ssub.s32 512, 512
          %131 = vsyncadd %s124, %s130
          %s132 = smul.addr %s128, 128
          %s133 = scalar_lea.hbm %s0, %s132
          %s134 = sshll.u32 %s127, 4
          %s135 = int_to_ptr.vmem [resolvable:$true] %s134
          %140 = dma.hbm_to_vmem [thread:$0]  %s133, 512, %s135, %s124, 128, 128, 8
        $region24: #{tpu_custom_call.1} parent=19 // pred_fallthru
          _
      $region20: #{tpu_custom_call.1} parent=5 // pred_fallthru
        _
      %p141 = scmp.le.s32.totalorder 1, %s15
      %p142 = scmp.lt.s32.totalorder %s15, 3
      %p143 = pnand %p141, %p142
      %p144 = pneg %p143
      // Predicated region
      $region25: #{tpu_custom_call.1} parent=5 // pred_check
        _
      $region26: #{tpu_custom_call.1} parent=5 // pred_check_branch
        %146 = sbr.rel (%p143) target = $region28
      $region27: #{tpu_custom_call.1} parent=5 // pred_region
        %s147 = ssub.s32 %s15, 1
        %s148 = sand.u32 %s28, 1
        %s149 = scalar_lea.sflag [#allocation3], %s148
        %s150 = sand.u32 %s28, 1
        %s151 = smul.addr %s150, 32
        %s152 = scalar_lea.vmem [#allocation2], %s151
        // Predicated region
        $region29: #{tpu_custom_call.1} parent=27 // pred_check
          %p153 = pneg %p41
        $region30: #{tpu_custom_call.1} parent=27 // pred_check_branch
          %155 = sbr.rel (%p153) target = $region32
        $region31: #{tpu_custom_call.1} parent=27 // pred_region
          %156 = dma.done %s149, 512
        $region32: #{tpu_custom_call.1} parent=27 // pred_fallthru
          _
        // Predicated region
        $region33: #{tpu_custom_call.1} parent=27 // pred_check
          %p157 = pneg %p62
        $region34: #{tpu_custom_call.1} parent=27 // pred_check_branch
          %159 = sbr.rel (%p157) target = $region36
        $region35: #{tpu_custom_call.1} parent=27 // pred_region
          %160 = dma.done [#allocation6], 12544
        $region36: #{tpu_custom_call.1} parent=27 // pred_fallthru
          _
        %s161 = sand.u32 %s28, 1
        %s162 = scalar_lea.sflag [#allocation3], %s161
        %s163 = sand.u32 %s28, 1
        %s164 = smul.addr %s163, 32
        %s165 = scalar_lea.vmem [#allocation2], %s164
        %p166 = pneg %p41
        %p167 = pneg %p38
        %p168 = pneg %p62
        %p169 = pneg %p59
        %p170 = pneg %p88
        %p171 = pneg %p85
        %s172 = sand.u32 %s75, 1
        %s173 = scalar_lea.sflag [#allocation4], %s172
        %s174 = sand.u32 %s75, 1
        %s175 = smul.addr %s174, 32
        %s176 = scalar_lea.vmem [#allocation7], %s175
        %s177 = smul.u32 4, %s20
        %s178 = smul.u32 4, %s20
        %v179 = vld [vmem:[#allocation5 + $0x300] sm:$0xff]
        %v180 = vld [vmem:[%s152] sm:$0xff]
        %v181 = vld [vmem:[%s152 + $0x8] sm:$0xff]
        %v182 = vld [vmem:[%s152 + $0x10] sm:$0xff]
        %v183 = vld [vmem:[%s152 + $0x18] sm:$0xff]
        %v184 = vld [vmem:[#allocation5] sm:$0xff]
        %v185 = vld [vmem:[#allocation5 + $0x8] sm:$0xff]
        %v186 = vld [vmem:[#allocation5 + $0x10] sm:$0xff]
        %v187 = vld [vmem:[#allocation5 + $0x18] sm:$0xff]
        %v188 = vld [vmem:[#allocation5 + $0x20] sm:$0xff]
        %v189 = vld [vmem:[#allocation5 + $0x28] sm:$0xff]
        %v190 = vld [vmem:[#allocation5 + $0x30] sm:$0xff]
        %v191 = vld [vmem:[#allocation5 + $0x38] sm:$0xff]
        %v192 = vld [vmem:[#allocation5 + $0x40] sm:$0xff]
        %v193 = vld [vmem:[#allocation5 + $0x48] sm:$0xff]
        %v194 = vld [vmem:[#allocation5 + $0x50] sm:$0xff]
        %v195 = vld [vmem:[#allocation5 + $0x58] sm:$0xff]
        %v196 = vld [vmem:[#allocation5 + $0x60] sm:$0xff]
        %v197 = vld [vmem:[#allocation5 + $0x68] sm:$0xff]
        %v198 = vld [vmem:[#allocation5 + $0x70] sm:$0xff]
        %v199 = vld [vmem:[#allocation5 + $0x78] sm:$0xff]
        %v200 = vlaneseq
        %v201 = vshrl.u32 %v200, 7
        %v202 = vsub.s32 0, %v201
        %v203 = vrot.slane %v179, %v202
        %204 = vmatprep.subr.mxu0 0.0
        %205 = vmatpush1.msra.mxu0 %v184
        %206 = vmatprep.subr.mxu0 0.0
        %207 = vmatpush1.msra.mxu0 %v185
        %208 = vmatprep.subr.mxu0 0.0
        %209 = vmatpush1.msra.mxu0 %v186
        %210 = vmatprep.subr.mxu0 0.0
        %211 = vmatpush1.msra.mxu0 %v187
        %212 = vmatprep.subr.mxu0 0.0
        %213 = vmatpush1.msra.mxu0 %v188
        %214 = vmatprep.subr.mxu0 0.0
        %215 = vmatpush1.msra.mxu0 %v189
        %216 = vmatprep.subr.mxu0 0.0
        %217 = vmatpush1.msra.mxu0 %v190
        %218 = vmatprep.subr.mxu0 0.0
        %219 = vmatpush1.msra.mxu0 %v191
        %220 = vmatprep.subr.mxu0 0.0
        %221 = vmatpush1.msra.mxu0 %v192
        %222 = vmatprep.subr.mxu0 0.0
        %223 = vmatpush1.msra.mxu0 %v193
        %224 = vmatprep.subr.mxu0 0.0
        %225 = vmatpush1.msra.mxu0 %v194
        %226 = vmatprep.subr.mxu0 0.0
        %227 = vmatpush1.msra.mxu0 %v195
        %228 = vmatprep.subr.mxu0 0.0
        %229 = vmatpush1.msra.mxu0 %v196
        %230 = vmatprep.subr.mxu0 0.0
        %231 = vmatpush1.msra.mxu0 %v197
        %232 = vmatprep.subr.mxu0 0.0
        %233 = vmatpush1.msra.mxu0 %v198
        %234 = vmatprep.subr.mxu0 0.0
        %235 = vmatpush1.msra.mxu0 %v199
        %236 = vmatprep.subr.mxu0 0.0
        %237 = vmatpush1.msra.mxu0 0.0
        %238 = vmatprep.subr.mxu0 0.0
        %239 = vmatpush1.msra.mxu0 0.0
        %240 = vmatprep.subr.mxu0 0.0
        %241 = vmatpush1.msra.mxu0 0.0
        %242 = vmatprep.subr.mxu0 0.0
        %243 = vmatpush1.msra.mxu0 0.0
        %244 = vmatprep.subr.mxu0 0.0
        %245 = vmatpush1.msra.mxu0 0.0
        %246 = vmatprep.subr.mxu0 0.0
        %247 = vmatpush1.msra.mxu0 0.0
        %248 = vmatprep.subr.mxu0 0.0
        %249 = vmatpush1.msra.mxu0 0.0
        %250 = vmatprep.subr.mxu0 0.0
        %251 = vmatpush1.msra.mxu0 0.0
        %252 = vmatprep.subr.mxu0 0.0
        %253 = vmatpush1.msra.mxu0 0.0
        %254 = vmatprep.subr.mxu0 0.0
        %255 = vmatpush1.msra.mxu0 0.0
        %256 = vmatprep.subr.mxu0 0.0
        %257 = vmatpush1.msra.mxu0 0.0
        %258 = vmatprep.subr.mxu0 0.0
        %259 = vmatpush1.msra.mxu0 0.0
        %260 = vmatprep.subr.mxu0 0.0
        %261 = vmatpush1.msra.mxu0 0.0
        %262 = vmatprep.subr.mxu0 0.0
        %263 = vmatpush1.msra.mxu0 0.0
        %264 = vmatprep.subr.mxu0 0.0
        %265 = vmatpush1.msra.mxu0 0.0
        %266 = vmatprep.subr.mxu0 0.0
        %267 = vmatpush1.msra.mxu0 0.0
        %268 = vmatprep.mubr.f32.mxu0 0.0
        %269 = vmatmul.mubr.f32.gmra.mrb[0].mxu0 %v180
        %v270 = vpop.f32.mrb[0].mxu0
        %v271 = vadd.f32 %v203, %v270
        %v272 = vpop.f32.mrb[0].mxu0
        %273 = vmatprep.mubr.f32.mxu0 0.0
        %274 = vmatmul.mubr.f32.gmra.mrb[0].mxu0 %v181
        %v275 = vpop.f32.mrb[0].mxu0
        %v276 = vadd.f32 %v203, %v275
        %v277 = vpop.f32.mrb[0].mxu0
        %278 = vmatprep.mubr.f32.mxu0 0.0
        %279 = vmatmul.mubr.f32.gmra.mrb[0].mxu0 %v182
        %v280 = vpop.f32.mrb[0].mxu0
        %v281 = vadd.f32 %v203, %v280
        %v282 = vpop.f32.mrb[0].mxu0
        %283 = vmatprep.mubr.f32.mxu0 0.0
        %284 = vmatmul.mubr.f32.gmra.mrb[0].mxu0 %v183
        %v285 = vpop.f32.mrb[0].mxu0
        %v286 = vadd.f32 %v203, %v285
        %v287 = vpop.f32.mrb[0].mxu0
        %288 = vdwg.mxu0
        %v289 = vmax.f32 %v271, 0.0
        %v290 = vmax.f32 %v276, 0.0
        %v291 = vmax.f32 %v281, 0.0
        %v292 = vmax.f32 %v286, 0.0
        %v293 = vld [vmem:[#allocation5 + $0x80] sm:$0xff]
        %v294 = vld [vmem:[#allocation5 + $0x88] sm:$0xff]
        %v295 = vld [vmem:[#allocation5 + $0x90] sm:$0xff]
        %v296 = vld [vmem:[#allocation5 + $0x98] sm:$0xff]
        %v297 = vld [vmem:[#allocation5 + $0xa0] sm:$0xff]
        %v298 = vld [vmem:[#allocation5 + $0xa8] sm:$0xff]
        %v299 = vld [vmem:[#allocation5 + $0xb0] sm:$0xff]
        %v300 = vld [vmem:[#allocation5 + $0xb8] sm:$0xff]
        %v301 = vld [vmem:[#allocation5 + $0xc0] sm:$0xff]
        %v302 = vld [vmem:[#allocation5 + $0xc8] sm:$0xff]
        %v303 = vld [vmem:[#allocation5 + $0xd0] sm:$0xff]
        %v304 = vld [vmem:[#allocation5 + $0xd8] sm:$0xff]
        %v305 = vld [vmem:[#allocation5 + $0xe0] sm:$0xff]
        %v306 = vld [vmem:[#allocation5 + $0xe8] sm:$0xff]
        %v307 = vld [vmem:[#allocation5 + $0xf0] sm:$0xff]
        %v308 = vld [vmem:[#allocation5 + $0xf8] sm:$0xff]
        %v309 = vlaneseq
        %v310 = vshrl.u32 %v309, 7
        %v311 = vsub.s32 1, %v310
        %v312 = vrot.slane %v179, %v311
        %313 = vmatprep.subr.mxu0 0.0
        %314 = vmatpush1.msra.mxu0 %v293
        %315 = vmatprep.subr.mxu0 0.0
        %316 = vmatpush1.msra.mxu0 %v294
        %317 = vmatprep.subr.mxu0 0.0
        %318 = vmatpush1.msra.mxu0 %v295
        %319 = vmatprep.subr.mxu0 0.0
        %320 = vmatpush1.msra.mxu0 %v296
        %321 = vmatprep.subr.mxu0 0.0
        %322 = vmatpush1.msra.mxu0 %v297
        %323 = vmatprep.subr.mxu0 0.0
        %324 = vmatpush1.msra.mxu0 %v298
        %325 = vmatprep.subr.mxu0 0.0
        %326 = vmatpush1.msra.mxu0 %v299
        %327 = vmatprep.subr.mxu0 0.0
        %328 = vmatpush1.msra.mxu0 %v300
        %329 = vmatprep.subr.mxu0 0.0
        %330 = vmatpush1.msra.mxu0 %v301
        %331 = vmatprep.subr.mxu0 0.0
        %332 = vmatpush1.msra.mxu0 %v302
        %333 = vmatprep.subr.mxu0 0.0
        %334 = vmatpush1.msra.mxu0 %v303
        %335 = vmatprep.subr.mxu0 0.0
        %336 = vmatpush1.msra.mxu0 %v304
        %337 = vmatprep.subr.mxu0 0.0
        %338 = vmatpush1.msra.mxu0 %v305
        %339 = vmatprep.subr.mxu0 0.0
        %340 = vmatpush1.msra.mxu0 %v306
        %341 = vmatprep.subr.mxu0 0.0
        %342 = vmatpush1.msra.mxu0 %v307
        %343 = vmatprep.subr.mxu0 0.0
        %344 = vmatpush1.msra.mxu0 %v308
        %345 = vmatprep.subr.mxu0 0.0
        %346 = vmatpush1.msra.mxu0 0.0
        %347 = vmatprep.subr.mxu0 0.0
        %348 = vmatpush1.msra.mxu0 0.0
        %349 = vmatprep.subr.mxu0 0.0
        %350 = vmatpush1.msra.mxu0 0.0
        %351 = vmatprep.subr.mxu0 0.0
        %352 = vmatpush1.msra.mxu0 0.0
        %353 = vmatprep.subr.mxu0 0.0
        %354 = vmatpush1.msra.mxu0 0.0
        %355 = vmatprep.subr.mxu0 0.0
        %356 = vmatpush1.msra.mxu0 0.0
        %357 = vmatprep.subr.mxu0 0.0
        %358 = vmatpush1.msra.mxu0 0.0
        %359 = vmatprep.subr.mxu0 0.0
        %360 = vmatpush1.msra.mxu0 0.0
        %361 = vmatprep.subr.mxu0 0.0
        %362 = vmatpush1.msra.mxu0 0.0
        %363 = vmatprep.subr.mxu0 0.0
        %364 = vmatpush1.msra.mxu0 0.0
        %365 = vmatprep.subr.mxu0 0.0
        %366 = vmatpush1.msra.mxu0 0.0
        %367 = vmatprep.subr.mxu0 0.0
        %368 = vmatpush1.msra.mxu0 0.0
        %369 = vmatprep.subr.mxu0 0.0
        %370 = vmatpush1.msra.mxu0 0.0
        %371 = vmatprep.subr.mxu0 0.0
        %372 = vmatpush1.msra.mxu0 0.0
        %373 = vmatprep.subr.mxu0 0.0
        %374 = vmatpush1.msra.mxu0 0.0
        %375 = vmatprep.subr.mxu0 0.0
        %376 = vmatpush1.msra.mxu0 0.0
        %377 = vmatprep.mubr.f32.mxu0 0.0
        %378 = vmatmul.mubr.f32.gmra.mrb[0].mxu0 %v289
        %v379 = vpop.f32.mrb[0].mxu0
        %v380 = vadd.f32 %v312, %v379
        %v381 = vpop.f32.mrb[0].mxu0
        %382 = vmatprep.mubr.f32.mxu0 0.0
        %383 = vmatmul.mubr.f32.gmra.mrb[0].mxu0 %v290
        %v384 = vpop.f32.mrb[0].mxu0
        %v385 = vadd.f32 %v312, %v384
        %v386 = vpop.f32.mrb[0].mxu0
        %387 = vmatprep.mubr.f32.mxu0 0.0
        %388 = vmatmul.mubr.f32.gmra.mrb[0].mxu0 %v291
        %v389 = vpop.f32.mrb[0].mxu0
        %v390 = vadd.f32 %v312, %v389
        %v391 = vpop.f32.mrb[0].mxu0
        %392 = vmatprep.mubr.f32.mxu0 0.0
        %393 = vmatmul.mubr.f32.gmra.mrb[0].mxu0 %v292
        %v394 = vpop.f32.mrb[0].mxu0
        %v395 = vadd.f32 %v312, %v394
        %v396 = vpop.f32.mrb[0].mxu0
        %397 = vdwg.mxu0
        %v398 = vmax.f32 %v380, 0.0
        %v399 = vmax.f32 %v385, 0.0
        %v400 = vmax.f32 %v390, 0.0
        %v401 = vmax.f32 %v395, 0.0
        %v402 = vld [vmem:[#allocation5 + $0x100] sm:$0xff]
        %v403 = vld [vmem:[#allocation5 + $0x108] sm:$0xff]
        %v404 = vld [vmem:[#allocation5 + $0x110] sm:$0xff]
        %v405 = vld [vmem:[#allocation5 + $0x118] sm:$0xff]
        %v406 = vld [vmem:[#allocation5 + $0x120] sm:$0xff]
        %v407 = vld [vmem:[#allocation5 + $0x128] sm:$0xff]
        %v408 = vld [vmem:[#allocation5 + $0x130] sm:$0xff]
        %v409 = vld [vmem:[#allocation5 + $0x138] sm:$0xff]
        %v410 = vld [vmem:[#allocation5 + $0x140] sm:$0xff]
        %v411 = vld [vmem:[#allocation5 + $0x148] sm:$0xff]
        %v412 = vld [vmem:[#allocation5 + $0x150] sm:$0xff]
        %v413 = vld [vmem:[#allocation5 + $0x158] sm:$0xff]
        %v414 = vld [vmem:[#allocation5 + $0x160] sm:$0xff]
        %v415 = vld [vmem:[#allocation5 + $0x168] sm:$0xff]
        %v416 = vld [vmem:[#allocation5 + $0x170] sm:$0xff]
        %v417 = vld [vmem:[#allocation5 + $0x178] sm:$0xff]
        %v418 = vlaneseq
        %v419 = vshrl.u32 %v418, 7
        %v420 = vsub.s32 2, %v419
        %v421 = vrot.slane %v179, %v420
        %422 = vmatprep.subr.mxu0 0.0
        %423 = vmatpush1.msra.mxu0 %v402
        %424 = vmatprep.subr.mxu0 0.0
        %425 = vmatpush1.msra.mxu0 %v403
        %426 = vmatprep.subr.mxu0 0.0
        %427 = vmatpush1.msra.mxu0 %v404
        %428 = vmatprep.subr.mxu0 0.0
        %429 = vmatpush1.msra.mxu0 %v405
        %430 = vmatprep.subr.mxu0 0.0
        %431 = vmatpush1.msra.mxu0 %v406
        %432 = vmatprep.subr.mxu0 0.0
        %433 = vmatpush1.msra.mxu0 %v407
        %434 = vmatprep.subr.mxu0 0.0
        %435 = vmatpush1.msra.mxu0 %v408
        %436 = vmatprep.subr.mxu0 0.0
        %437 = vmatpush1.msra.mxu0 %v409
        %438 = vmatprep.subr.mxu0 0.0
        %439 = vmatpush1.msra.mxu0 %v410
        %440 = vmatprep.subr.mxu0 0.0
        %441 = vmatpush1.msra.mxu0 %v411
        %442 = vmatprep.subr.mxu0 0.0
        %443 = vmatpush1.msra.mxu0 %v412
        %444 = vmatprep.subr.mxu0 0.0
        %445 = vmatpush1.msra.mxu0 %v413
        %446 = vmatprep.subr.mxu0 0.0
        %447 = vmatpush1.msra.mxu0 %v414
        %448 = vmatprep.subr.mxu0 0.0
        %449 = vmatpush1.msra.mxu0 %v415
        %450 = vmatprep.subr.mxu0 0.0
        %451 = vmatpush1.msra.mxu0 %v416
        %452 = vmatprep.subr.mxu0 0.0
        %453 = vmatpush1.msra.mxu0 %v417
        %454 = vmatprep.subr.mxu0 0.0
        %455 = vmatpush1.msra.mxu0 0.0
        %456 = vmatprep.subr.mxu0 0.0
        %457 = vmatpush1.msra.mxu0 0.0
        %458 = vmatprep.subr.mxu0 0.0
        %459 = vmatpush1.msra.mxu0 0.0
        %460 = vmatprep.subr.mxu0 0.0
        %461 = vmatpush1.msra.mxu0 0.0
        %462 = vmatprep.subr.mxu0 0.0
        %463 = vmatpush1.msra.mxu0 0.0
        %464 = vmatprep.subr.mxu0 0.0
        %465 = vmatpush1.msra.mxu0 0.0
        %466 = vmatprep.subr.mxu0 0.0
        %467 = vmatpush1.msra.mxu0 0.0
        %468 = vmatprep.subr.mxu0 0.0
        %469 = vmatpush1.msra.mxu0 0.0
        %470 = vmatprep.subr.mxu0 0.0
        %471 = vmatpush1.msra.mxu0 0.0
        %472 = vmatprep.subr.mxu0 0.0
        %473 = vmatpush1.msra.mxu0 0.0
        %474 = vmatprep.subr.mxu0 0.0
        %475 = vmatpush1.msra.mxu0 0.0
        %476 = vmatprep.subr.mxu0 0.0
        %477 = vmatpush1.msra.mxu0 0.0
        %478 = vmatprep.subr.mxu0 0.0
        %479 = vmatpush1.msra.mxu0 0.0
        %480 = vmatprep.subr.mxu0 0.0
        %481 = vmatpush1.msra.mxu0 0.0
        %482 = vmatprep.subr.mxu0 0.0
        %483 = vmatpush1.msra.mxu0 0.0
        %484 = vmatprep.subr.mxu0 0.0
        %485 = vmatpush1.msra.mxu0 0.0
        %486 = vmatprep.mubr.f32.mxu0 0.0
        %487 = vmatmul.mubr.f32.gmra.mrb[0].mxu0 %v398
        %v488 = vpop.f32.mrb[0].mxu0
        %v489 = vadd.f32 %v421, %v488
        %v490 = vpop.f32.mrb[0].mxu0
        %491 = vmatprep.mubr.f32.mxu0 0.0
        %492 = vmatmul.mubr.f32.gmra.mrb[0].mxu0 %v399
        %v493 = vpop.f32.mrb[0].mxu0
        %v494 = vadd.f32 %v421, %v493
        %v495 = vpop.f32.mrb[0].mxu0
        %496 = vmatprep.mubr.f32.mxu0 0.0
        %497 = vmatmul.mubr.f32.gmra.mrb[0].mxu0 %v400
        %v498 = vpop.f32.mrb[0].mxu0
        %v499 = vadd.f32 %v421, %v498
        %v500 = vpop.f32.mrb[0].mxu0
        %501 = vmatprep.mubr.f32.mxu0 0.0
        %502 = vmatmul.mubr.f32.gmra.mrb[0].mxu0 %v401
        %v503 = vpop.f32.mrb[0].mxu0
        %v504 = vadd.f32 %v421, %v503
        %v505 = vpop.f32.mrb[0].mxu0
        %506 = vdwg.mxu0
        %v507 = vld [vmem:[#allocation5 + $0x180] sm:$0xff]
        %v508 = vld [vmem:[#allocation5 + $0x188] sm:$0xff]
        %v509 = vld [vmem:[#allocation5 + $0x190] sm:$0xff]
        %v510 = vld [vmem:[#allocation5 + $0x198] sm:$0xff]
        %v511 = vld [vmem:[#allocation5 + $0x1a0] sm:$0xff]
        %v512 = vld [vmem:[#allocation5 + $0x1a8] sm:$0xff]
        %v513 = vld [vmem:[#allocation5 + $0x1b0] sm:$0xff]
        %v514 = vld [vmem:[#allocation5 + $0x1b8] sm:$0xff]
        %v515 = vld [vmem:[#allocation5 + $0x1c0] sm:$0xff]
        %v516 = vld [vmem:[#allocation5 + $0x1c8] sm:$0xff]
        %v517 = vld [vmem:[#allocation5 + $0x1d0] sm:$0xff]
        %v518 = vld [vmem:[#allocation5 + $0x1d8] sm:$0xff]
        %v519 = vld [vmem:[#allocation5 + $0x1e0] sm:$0xff]
        %v520 = vld [vmem:[#allocation5 + $0x1e8] sm:$0xff]
        %v521 = vld [vmem:[#allocation5 + $0x1f0] sm:$0xff]
        %v522 = vld [vmem:[#allocation5 + $0x1f8] sm:$0xff]
        %v523 = vlaneseq
        %v524 = vshrl.u32 %v523, 7
        %v525 = vsub.s32 3, %v524
        %v526 = vrot.slane %v179, %v525
        %527 = vmatprep.subr.mxu0 0.0
        %528 = vmatpush1.msra.mxu0 %v507
        %529 = vmatprep.subr.mxu0 0.0
        %530 = vmatpush1.msra.mxu0 %v508
        %531 = vmatprep.subr.mxu0 0.0
        %532 = vmatpush1.msra.mxu0 %v509
        %533 = vmatprep.subr.mxu0 0.0
        %534 = vmatpush1.msra.mxu0 %v510
        %535 = vmatprep.subr.mxu0 0.0
        %536 = vmatpush1.msra.mxu0 %v511
        %537 = vmatprep.subr.mxu0 0.0
        %538 = vmatpush1.msra.mxu0 %v512
        %539 = vmatprep.subr.mxu0 0.0
        %540 = vmatpush1.msra.mxu0 %v513
        %541 = vmatprep.subr.mxu0 0.0
        %542 = vmatpush1.msra.mxu0 %v514
        %543 = vmatprep.subr.mxu0 0.0
        %544 = vmatpush1.msra.mxu0 %v515
        %545 = vmatprep.subr.mxu0 0.0
        %546 = vmatpush1.msra.mxu0 %v516
        %547 = vmatprep.subr.mxu0 0.0
        %548 = vmatpush1.msra.mxu0 %v517
        %549 = vmatprep.subr.mxu0 0.0
        %550 = vmatpush1.msra.mxu0 %v518
        %551 = vmatprep.subr.mxu0 0.0
        %552 = vmatpush1.msra.mxu0 %v519
        %553 = vmatprep.subr.mxu0 0.0
        %554 = vmatpush1.msra.mxu0 %v520
        %555 = vmatprep.subr.mxu0 0.0
        %556 = vmatpush1.msra.mxu0 %v521
        %557 = vmatprep.subr.mxu0 0.0
        %558 = vmatpush1.msra.mxu0 %v522
        %559 = vmatprep.subr.mxu0 0.0
        %560 = vmatpush1.msra.mxu0 0.0
        %561 = vmatprep.subr.mxu0 0.0
        %562 = vmatpush1.msra.mxu0 0.0
        %563 = vmatprep.subr.mxu0 0.0
        %564 = vmatpush1.msra.mxu0 0.0
        %565 = vmatprep.subr.mxu0 0.0
        %566 = vmatpush1.msra.mxu0 0.0
        %567 = vmatprep.subr.mxu0 0.0
        %568 = vmatpush1.msra.mxu0 0.0
        %569 = vmatprep.subr.mxu0 0.0
        %570 = vmatpush1.msra.mxu0 0.0
        %571 = vmatprep.subr.mxu0 0.0
        %572 = vmatpush1.msra.mxu0 0.0
        %573 = vmatprep.subr.mxu0 0.0
        %574 = vmatpush1.msra.mxu0 0.0
        %575 = vmatprep.subr.mxu0 0.0
        %576 = vmatpush1.msra.mxu0 0.0
        %577 = vmatprep.subr.mxu0 0.0
        %578 = vmatpush1.msra.mxu0 0.0
        %579 = vmatprep.subr.mxu0 0.0
        %580 = vmatpush1.msra.mxu0 0.0
        %581 = vmatprep.subr.mxu0 0.0
        %582 = vmatpush1.msra.mxu0 0.0
        %583 = vmatprep.subr.mxu0 0.0
        %584 = vmatpush1.msra.mxu0 0.0
        %585 = vmatprep.subr.mxu0 0.0
        %586 = vmatpush1.msra.mxu0 0.0
        %587 = vmatprep.subr.mxu0 0.0
        %588 = vmatpush1.msra.mxu0 0.0
        %589 = vmatprep.subr.mxu0 0.0
        %590 = vmatpush1.msra.mxu0 0.0
        %591 = vmatprep.mubr.f32.mxu0 0.0
        %592 = vmatmul.mubr.f32.gmra.mrb[0].mxu0 %v489
        %v593 = vpop.f32.mrb[0].mxu0
        %v594 = vadd.f32 %v526, %v593
        %v595 = vpop.f32.mrb[0].mxu0
        %596 = vmatprep.mubr.f32.mxu0 0.0
        %597 = vmatmul.mubr.f32.gmra.mrb[0].mxu0 %v494
        %v598 = vpop.f32.mrb[0].mxu0
        %v599 = vadd.f32 %v526, %v598
        %v600 = vpop.f32.mrb[0].mxu0
        %601 = vmatprep.mubr.f32.mxu0 0.0
        %602 = vmatmul.mubr.f32.gmra.mrb[0].mxu0 %v499
        %v603 = vpop.f32.mrb[0].mxu0
        %v604 = vadd.f32 %v526, %v603
        %v605 = vpop.f32.mrb[0].mxu0
        %606 = vmatprep.mubr.f32.mxu0 0.0
        %607 = vmatmul.mubr.f32.gmra.mrb[0].mxu0 %v504
        %v608 = vpop.f32.mrb[0].mxu0
        %v609 = vadd.f32 %v526, %v608
        %v610 = vpop.f32.mrb[0].mxu0
        %611 = vdwg.mxu0
        %v612 = vmax.f32 %v594, 0.0
        %v613 = vmax.f32 %v599, 0.0
        %v614 = vmax.f32 %v604, 0.0
        %v615 = vmax.f32 %v609, 0.0
        %v616 = vld [vmem:[#allocation5 + $0x200] sm:$0xff]
        %v617 = vld [vmem:[#allocation5 + $0x208] sm:$0xff]
        %v618 = vld [vmem:[#allocation5 + $0x210] sm:$0xff]
        %v619 = vld [vmem:[#allocation5 + $0x218] sm:$0xff]
        %v620 = vld [vmem:[#allocation5 + $0x220] sm:$0xff]
        %v621 = vld [vmem:[#allocation5 + $0x228] sm:$0xff]
        %v622 = vld [vmem:[#allocation5 + $0x230] sm:$0xff]
        %v623 = vld [vmem:[#allocation5 + $0x238] sm:$0xff]
        %v624 = vld [vmem:[#allocation5 + $0x240] sm:$0xff]
        %v625 = vld [vmem:[#allocation5 + $0x248] sm:$0xff]
        %v626 = vld [vmem:[#allocation5 + $0x250] sm:$0xff]
        %v627 = vld [vmem:[#allocation5 + $0x258] sm:$0xff]
        %v628 = vld [vmem:[#allocation5 + $0x260] sm:$0xff]
        %v629 = vld [vmem:[#allocation5 + $0x268] sm:$0xff]
        %v630 = vld [vmem:[#allocation5 + $0x270] sm:$0xff]
        %v631 = vld [vmem:[#allocation5 + $0x278] sm:$0xff]
        %v632 = vlaneseq
        %v633 = vshrl.u32 %v632, 7
        %v634 = vsub.s32 4, %v633
        %v635 = vrot.slane %v179, %v634
        %636 = vmatprep.subr.mxu0 0.0
        %637 = vmatpush1.msra.mxu0 %v616
        %638 = vmatprep.subr.mxu0 0.0
        %639 = vmatpush1.msra.mxu0 %v617
        %640 = vmatprep.subr.mxu0 0.0
        %641 = vmatpush1.msra.mxu0 %v618
        %642 = vmatprep.subr.mxu0 0.0
        %643 = vmatpush1.msra.mxu0 %v619
        %644 = vmatprep.subr.mxu0 0.0
        %645 = vmatpush1.msra.mxu0 %v620
        %646 = vmatprep.subr.mxu0 0.0
        %647 = vmatpush1.msra.mxu0 %v621
        %648 = vmatprep.subr.mxu0 0.0
        %649 = vmatpush1.msra.mxu0 %v622
        %650 = vmatprep.subr.mxu0 0.0
        %651 = vmatpush1.msra.mxu0 %v623
        %652 = vmatprep.subr.mxu0 0.0
        %653 = vmatpush1.msra.mxu0 %v624
        %654 = vmatprep.subr.mxu0 0.0
        %655 = vmatpush1.msra.mxu0 %v625
        %656 = vmatprep.subr.mxu0 0.0
        %657 = vmatpush1.msra.mxu0 %v626
        %658 = vmatprep.subr.mxu0 0.0
        %659 = vmatpush1.msra.mxu0 %v627
        %660 = vmatprep.subr.mxu0 0.0
        %661 = vmatpush1.msra.mxu0 %v628
        %662 = vmatprep.subr.mxu0 0.0
        %663 = vmatpush1.msra.mxu0 %v629
        %664 = vmatprep.subr.mxu0 0.0
        %665 = vmatpush1.msra.mxu0 %v630
        %666 = vmatprep.subr.mxu0 0.0
        %667 = vmatpush1.msra.mxu0 %v631
        %668 = vmatprep.subr.mxu0 0.0
        %669 = vmatpush1.msra.mxu0 0.0
        %670 = vmatprep.subr.mxu0 0.0
        %671 = vmatpush1.msra.mxu0 0.0
        %672 = vmatprep.subr.mxu0 0.0
        %673 = vmatpush1.msra.mxu0 0.0
        %674 = vmatprep.subr.mxu0 0.0
        %675 = vmatpush1.msra.mxu0 0.0
        %676 = vmatprep.subr.mxu0 0.0
        %677 = vmatpush1.msra.mxu0 0.0
        %678 = vmatprep.subr.mxu0 0.0
        %679 = vmatpush1.msra.mxu0 0.0
        %680 = vmatprep.subr.mxu0 0.0
        %681 = vmatpush1.msra.mxu0 0.0
        %682 = vmatprep.subr.mxu0 0.0
        %683 = vmatpush1.msra.mxu0 0.0
        %684 = vmatprep.subr.mxu0 0.0
        %685 = vmatpush1.msra.mxu0 0.0
        %686 = vmatprep.subr.mxu0 0.0
        %687 = vmatpush1.msra.mxu0 0.0
        %688 = vmatprep.subr.mxu0 0.0
        %689 = vmatpush1.msra.mxu0 0.0
        %690 = vmatprep.subr.mxu0 0.0
        %691 = vmatpush1.msra.mxu0 0.0
        %692 = vmatprep.subr.mxu0 0.0
        %693 = vmatpush1.msra.mxu0 0.0
        %694 = vmatprep.subr.mxu0 0.0
        %695 = vmatpush1.msra.mxu0 0.0
        %696 = vmatprep.subr.mxu0 0.0
        %697 = vmatpush1.msra.mxu0 0.0
        %698 = vmatprep.subr.mxu0 0.0
        %699 = vmatpush1.msra.mxu0 0.0
        %700 = vmatprep.mubr.f32.mxu0 0.0
        %701 = vmatmul.mubr.f32.gmra.mrb[0].mxu0 %v612
        %v702 = vpop.f32.mrb[0].mxu0
        %v703 = vadd.f32 %v635, %v702
        %v704 = vpop.f32.mrb[0].mxu0
        %705 = vmatprep.mubr.f32.mxu0 0.0
        %706 = vmatmul.mubr.f32.gmra.mrb[0].mxu0 %v613
        %v707 = vpop.f32.mrb[0].mxu0
        %v708 = vadd.f32 %v635, %v707
        %v709 = vpop.f32.mrb[0].mxu0
        %710 = vmatprep.mubr.f32.mxu0 0.0
        %711 = vmatmul.mubr.f32.gmra.mrb[0].mxu0 %v614
        %v712 = vpop.f32.mrb[0].mxu0
        %v713 = vadd.f32 %v635, %v712
        %v714 = vpop.f32.mrb[0].mxu0
        %715 = vmatprep.mubr.f32.mxu0 0.0
        %716 = vmatmul.mubr.f32.gmra.mrb[0].mxu0 %v615
        %v717 = vpop.f32.mrb[0].mxu0
        %v718 = vadd.f32 %v635, %v717
        %v719 = vpop.f32.mrb[0].mxu0
        %720 = vdwg.mxu0
        %v721 = vmax.f32 %v703, 0.0
        %v722 = vmax.f32 %v708, 0.0
        %v723 = vmax.f32 %v713, 0.0
        %v724 = vmax.f32 %v718, 0.0
        %v725 = vld [vmem:[#allocation5 + $0x280] sm:$0xff]
        %v726 = vld [vmem:[#allocation5 + $0x288] sm:$0xff]
        %v727 = vld [vmem:[#allocation5 + $0x290] sm:$0xff]
        %v728 = vld [vmem:[#allocation5 + $0x298] sm:$0xff]
        %v729 = vld [vmem:[#allocation5 + $0x2a0] sm:$0xff]
        %v730 = vld [vmem:[#allocation5 + $0x2a8] sm:$0xff]
        %v731 = vld [vmem:[#allocation5 + $0x2b0] sm:$0xff]
        %v732 = vld [vmem:[#allocation5 + $0x2b8] sm:$0xff]
        %v733 = vld [vmem:[#allocation5 + $0x2c0] sm:$0xff]
        %v734 = vld [vmem:[#allocation5 + $0x2c8] sm:$0xff]
        %v735 = vld [vmem:[#allocation5 + $0x2d0] sm:$0xff]
        %v736 = vld [vmem:[#allocation5 + $0x2d8] sm:$0xff]
        %v737 = vld [vmem:[#allocation5 + $0x2e0] sm:$0xff]
        %v738 = vld [vmem:[#allocation5 + $0x2e8] sm:$0xff]
        %v739 = vld [vmem:[#allocation5 + $0x2f0] sm:$0xff]
        %v740 = vld [vmem:[#allocation5 + $0x2f8] sm:$0xff]
        %v741 = vlaneseq
        %v742 = vshrl.u32 %v741, 7
        %v743 = vsub.s32 5, %v742
        %v744 = vrot.slane %v179, %v743
        %745 = vmatprep.subr.mxu0 0.0
        %746 = vmatpush1.msra.mxu0 %v725
        %747 = vmatprep.subr.mxu0 0.0
        %748 = vmatpush1.msra.mxu0 %v726
        %749 = vmatprep.subr.mxu0 0.0
        %750 = vmatpush1.msra.mxu0 %v727
        %751 = vmatprep.subr.mxu0 0.0
        %752 = vmatpush1.msra.mxu0 %v728
        %753 = vmatprep.subr.mxu0 0.0
        %754 = vmatpush1.msra.mxu0 %v729
        %755 = vmatprep.subr.mxu0 0.0
        %756 = vmatpush1.msra.mxu0 %v730
        %757 = vmatprep.subr.mxu0 0.0
        %758 = vmatpush1.msra.mxu0 %v731
        %759 = vmatprep.subr.mxu0 0.0
        %760 = vmatpush1.msra.mxu0 %v732
        %761 = vmatprep.subr.mxu0 0.0
        %762 = vmatpush1.msra.mxu0 %v733
        %763 = vmatprep.subr.mxu0 0.0
        %764 = vmatpush1.msra.mxu0 %v734
        %765 = vmatprep.subr.mxu0 0.0
        %766 = vmatpush1.msra.mxu0 %v735
        %767 = vmatprep.subr.mxu0 0.0
        %768 = vmatpush1.msra.mxu0 %v736
        %769 = vmatprep.subr.mxu0 0.0
        %770 = vmatpush1.msra.mxu0 %v737
        %771 = vmatprep.subr.mxu0 0.0
        %772 = vmatpush1.msra.mxu0 %v738
        %773 = vmatprep.subr.mxu0 0.0
        %774 = vmatpush1.msra.mxu0 %v739
        %775 = vmatprep.subr.mxu0 0.0
        %776 = vmatpush1.msra.mxu0 %v740
        %777 = vmatprep.subr.mxu0 0.0
        %778 = vmatpush1.msra.mxu0 0.0
        %779 = vmatprep.subr.mxu0 0.0
        %780 = vmatpush1.msra.mxu0 0.0
        %781 = vmatprep.subr.mxu0 0.0
        %782 = vmatpush1.msra.mxu0 0.0
        %783 = vmatprep.subr.mxu0 0.0
        %784 = vmatpush1.msra.mxu0 0.0
        %785 = vmatprep.subr.mxu0 0.0
        %786 = vmatpush1.msra.mxu0 0.0
        %787 = vmatprep.subr.mxu0 0.0
        %788 = vmatpush1.msra.mxu0 0.0
        %789 = vmatprep.subr.mxu0 0.0
        %790 = vmatpush1.msra.mxu0 0.0
        %791 = vmatprep.subr.mxu0 0.0
        %792 = vmatpush1.msra.mxu0 0.0
        %793 = vmatprep.subr.mxu0 0.0
        %794 = vmatpush1.msra.mxu0 0.0
        %795 = vmatprep.subr.mxu0 0.0
        %796 = vmatpush1.msra.mxu0 0.0
        %797 = vmatprep.subr.mxu0 0.0
        %798 = vmatpush1.msra.mxu0 0.0
        %799 = vmatprep.subr.mxu0 0.0
        %800 = vmatpush1.msra.mxu0 0.0
        %801 = vmatprep.subr.mxu0 0.0
        %802 = vmatpush1.msra.mxu0 0.0
        %803 = vmatprep.subr.mxu0 0.0
        %804 = vmatpush1.msra.mxu0 0.0
        %805 = vmatprep.subr.mxu0 0.0
        %806 = vmatpush1.msra.mxu0 0.0
        %807 = vmatprep.subr.mxu0 0.0
        %808 = vmatpush1.msra.mxu0 0.0
        %809 = vmatprep.mubr.f32.mxu0 0.0
        %810 = vmatmul.mubr.f32.gmra.mrb[0].mxu0 %v721
        %v811 = vpop.f32.mrb[0].mxu0
        %v812 = vadd.f32 %v744, %v811
        %v813 = vpop.f32.mrb[0].mxu0
        %814 = vmatprep.mubr.f32.mxu0 0.0
        %815 = vmatmul.mubr.f32.gmra.mrb[0].mxu0 %v722
        %v816 = vpop.f32.mrb[0].mxu0
        %v817 = vadd.f32 %v744, %v816
        %v818 = vpop.f32.mrb[0].mxu0
        %819 = vmatprep.mubr.f32.mxu0 0.0
        %820 = vmatmul.mubr.f32.gmra.mrb[0].mxu0 %v723
        %v821 = vpop.f32.mrb[0].mxu0
        %v822 = vadd.f32 %v744, %v821
        %v823 = vpop.f32.mrb[0].mxu0
        %824 = vmatprep.mubr.f32.mxu0 0.0
        %825 = vmatmul.mubr.f32.gmra.mrb[0].mxu0 %v724
        %v826 = vpop.f32.mrb[0].mxu0
        %v827 = vadd.f32 %v744, %v826
        %v828 = vpop.f32.mrb[0].mxu0
        %829 = vdwg.mxu0
        %v830 = vadd.f32 %v489, %v812
        %v831 = vadd.f32 %v494, %v817
        %v832 = vadd.f32 %v499, %v822
        %v833 = vadd.f32 %v504, %v827
        %834 = vst [vmem:[%s176] sm:$0xff] %v830
        %835 = vst [vmem:[%s176 + $0x8] sm:$0xff] %v831
        %836 = vst [vmem:[%s176 + $0x10] sm:$0xff] %v832
        %837 = vst [vmem:[%s176 + $0x18] sm:$0xff] %v833
        %s838 = sand.u32 %s75, 1
        %s839 = scalar_lea.sflag [#allocation4], %s838
        %s840 = sand.u32 %s75, 1
        %s841 = smul.addr %s840, 32
        %s842 = scalar_lea.vmem [#allocation7], %s841
        // Predicated region
        $region37: #{tpu_custom_call.1} parent=27 // pred_check
          %p843 = pneg %p85
        $region38: #{tpu_custom_call.1} parent=27 // pred_check_branch
          %845 = sbr.rel (%p843) target = $region40
        $region39: #{tpu_custom_call.1} parent=27 // pred_region
          %s846 = smul.u32 4, %s20
          %s848 = ssub.s32 512, 512
          %849 = vsyncadd %s839, %s848
          %s850 = smul.addr %s846, 128
          %s851 = scalar_lea.hbm %s2, %s850
          %s852 = sshll.u32 %s842, 4
          %s853 = int_to_ptr.vmem [resolvable:$true] %s852
          %858 = dma.vmem_to_hbm [thread:$0]  %s853, 512, %s851, %s839, 128, 128, 8
        $region40: #{tpu_custom_call.1} parent=27 // pred_fallthru
          _
      $region28: #{tpu_custom_call.1} parent=5 // pred_fallthru
        _
      %p859 = scmp.le.s32.totalorder 2, %s15
      // Predicated region
      $region41: #{tpu_custom_call.1} parent=5 // pred_check
        %p860 = pneg %p859
      $region42: #{tpu_custom_call.1} parent=5 // pred_check_branch
        %862 = sbr.rel (%p860) target = $region44
      $region43: #{tpu_custom_call.1} parent=5 // pred_region
        %s863 = ssub.s32 %s15, 2
        // Predicated region
        $region45: #{tpu_custom_call.1} parent=43 // pred_check
          %p864 = pneg %p91
        $region46: #{tpu_custom_call.1} parent=43 // pred_check_branch
          %866 = sbr.rel (%p864) target = $region48
        $region47: #{tpu_custom_call.1} parent=43 // pred_region
          %s867 = sand.u32 %s76, 1
          %s868 = scalar_lea.sflag [#allocation4], %s867
          %s869 = sand.u32 %s76, 1
          %s870 = smul.addr %s869, 32
          %s871 = scalar_lea.vmem [#allocation7], %s870
          %872 = dma.done %s868, 512
        $region48: #{tpu_custom_call.1} parent=43 // pred_fallthru
          _
      $region44: #{tpu_custom_call.1} parent=5 // pred_fallthru
        _
    $region6: #{tpu_custom_call.1} parent=1 // loop_footer
      %s19 = sadd.s32 1, %s15
    $region7: #{tpu_custom_call.1} parent=1 // loop_footer_branch
      %14 = sbr.rel target = $region3
    $region8: #{tpu_custom_call.1} parent=1 // loop_exit
      _
    %873 = vsyncpa [#allocation3], 1
    %s874 = scalar_lea.sflag [#allocation3], 1
    %875 = vsyncpa %s874, 1
    %876 = vsyncpa [#allocation6], 1
    %877 = vsyncpa [#allocation4], 1
    %s878 = scalar_lea.sflag [#allocation4], 1
    %879 = vsyncpa %s878, 1

</llo_original>
